<compile_context>
chip_gen: v6e
topology: v6e:2x2x1
jax: 0.10.0
libtpu: 0.0.40
codegen_flags: <defaults>
</compile_context>

<pallas_src>
import functools
import math

import jax
import jax.numpy as jnp
import numpy as np
from jax import lax
from jax.experimental import pallas as pl
from jax.experimental.pallas import tpu as pltpu

EPS = 1e-8  # the `b` constant in the PyTorch forward


def _round_up(x, m):
    return ((x + m - 1) // m) * m


# ---------------------------------------------------------------------------
# Kernel
# ---------------------------------------------------------------------------
def _son_kernel(topks, n_chunks, sub_rows,
                maps_ref, pool_ref, w1t_ref, w2_ref, avg_ref,
                out_ref, xsun_acc):
    """One (batch-tile, CHW-chunk) grid step.

    The chunk axis is the trailing "arbitrary" grid axis: each step pools one
    slice of channels via an MXU matmul into the VMEM scratch; the last chunk
    runs fc1 / exp / top-k routing and emits the fused output tile.
    """
    k = pl.program_id(1)

    # AdaptiveAvgPool2d(1) for this channel chunk:
    # (TB, chunk_c*HW) @ (chunk_c*HW, chunk_c) block-diag 1/HW -> f32 partial.
    xsun_acc[k] = jnp.dot(maps_ref[...], pool_ref[...],
                          preferred_element_type=jnp.float32)

    def finalize():
        avg = avg_ref[0, 0]
        w1t = w1t_ref[...]                                  # (C, G), hoisted
        w2 = w2_ref[...]                                    # (1, G), hoisted
        kmax = max(topks)

        def head_block(r0):
            # Reassemble the pooled (sub_rows, C) slab from the chunk scratch.
            xs = jnp.concatenate(
                [xsun_acc[c, pl.ds(r0, sub_rows), :] for c in range(n_chunks)],
                axis=1)
            x_log = jnp.log(jnp.tanh(jnp.maximum(xs, 0.0) + EPS))
            xgl = jnp.dot(x_log, w1t, preferred_element_type=jnp.float32)
            x_groups = jnp.exp(xgl) - EPS                   # (sub, G)
            vote = x_groups * w2                            # routed votes
            dense = jnp.sum(vote, axis=1, keepdims=True)    # do_sparse=False head

            sub, g = vote.shape
            lane = lax.broadcasted_iota(jnp.int32, (sub, g), 1)
            # Packed key = 2*lane + sign bit: a single cross-lane min recovers
            # both the winning lane and its sign (2 XLU reductions per step).
            packed = lane * 2 + (vote < 0.0).astype(jnp.int32)
            absv = jnp.abs(vote)

            cum = jnp.zeros((sub, 1), jnp.float32)
            cum_at = {}
            for step in range(1, kmax + 1):                 # explicit 8-step unroll
                m = jnp.max(absv, axis=1, keepdims=True)
                key = jnp.min(jnp.where(absv == m, packed, 2 * g),
                              axis=1, keepdims=True)
                neg = (key & 1).astype(jnp.float32)         # 1 => negative vote
                cum = cum + m * (1.0 - 2.0 * neg)           # selected vote = +-max|vote|
                absv = jnp.where(lane == (key >> 1), -1.0, absv)
                cum_at[step] = cum

            heads = [cum_at[t] + avg for t in topks] + [dense + avg]
            # One lane-dense store: [x_sun | x_groups_log | heads].
            out_ref[pl.ds(r0, sub_rows), :] = jnp.concatenate(
                [xs, xgl] + heads, axis=1)

        n_sub = out_ref.shape[0] // sub_rows
        if n_sub == 1:
            head_block(0)
        else:
            # Row sub-blocks bound vreg pressure of vote/absv/packed at big TB.
            @pl.loop(0, n_sub)
            def _(s):
                r0 = s * sub_rows
                if sub_rows % 8 == 0:
                    r0 = pl.multiple_of(r0, sub_rows)
                head_block(r0)

    if n_chunks == 1:
        finalize()
    else:
        pl.when(k == n_chunks - 1)(finalize)


# ---------------------------------------------------------------------------
# Wrapper
# ---------------------------------------------------------------------------
def _hw_params():
    """Per-generation VMEM budget and TensorCore-count heuristics."""
    vmem_cap = 64 << 20                                # conservative: v7x per-TC
    try:
        vmem_cap = int(pltpu.get_tpu_info().vmem_capacity_bytes)
    except Exception:
        pass
    multi_core = False
    try:
        kind = jax.devices()[0].device_kind.lower()
        multi_core = any(t in kind for t in ("v4", "v5p", "v7", "tpu7"))
    except Exception:
        pass
    return vmem_cap, multi_core


def net_son_top_sin_reg(maps, w1, w2, label_avg,
                        topks=(1, 2, 3, 4, 5, 6, 7, 8),
                        max_tile_bytes=None, max_head_rows=128):
    """maps: (B, C, H, W); w1: (G, C) fc1 weight; w2: (1, G) fc2 weight."""
    maps_in = maps
    B, C, H, W = maps.shape
    G = int(w1.shape[0])
    HW = H * W
    topks = tuple(int(t) for t in topks)
    assert topks and all(1 <= t <= G for t in topks), "need 1 <= topk <= n_groups"
    n_out = len(topks) + 1
    n_cols = C + G + n_out

    # Stream maps in the producer's dtype (bf16 halves HBM traffic); the f32
    # upcast happens inside the kernel's f32-accumulating pooling matmul.
    if maps.dtype not in (jnp.bfloat16, jnp.float32):
        maps = maps.astype(jnp.float32)
    stream_dtype = maps.dtype
    itemsize = maps.dtype.itemsize
    maps_2d = maps.reshape(B, C * HW)                  # contiguous, free reshape

    # ---- per-generation budgets --------------------------------------------
    vmem_cap, multi_core = _hw_params()
    limit_cap = (3 * vmem_cap) // 4                    # 96 MiB (128-MiB chips) / 48 MiB (v7x)
    slab_bytes = int(max_tile_bytes) if max_tile_bytes else limit_cap // 6

    # ---- channel chunking: chunk = chunk_c*HW must be lane-dense (multiple of
    # 128) and small enough that >=8 rows plus the pooling matrix fit. --------
    m_req = 128 // math.gcd(HW, 128)
    cands = [C] + sorted((d for d in range(m_req, C, m_req) if C % d == 0),
                         reverse=True)
    chunk_c = cands[-1]
    for cc in cands:
        fits_rows = cc * HW * itemsize * min(B, 8) <= slab_bytes
        fits_pool = cc * HW * cc * itemsize <= slab_bytes
        if fits_rows and fits_pool:
            chunk_c = cc
            break
    chunk = chunk_c * HW
    n_chunks = C // chunk_c

    # ---- batch tile ----------------------------------------------------------
    tb = min(B, max(1, slab_bytes // (chunk * itemsize)))
    if multi_core and B > 8:                           # >=2 tiles for the 2nd TC
        tb = min(tb, max(8, 8 * pl.cdiv(pl.cdiv(B, 2), 8)))
    if tb < B:
        tb = max(8, (tb // 8) * 8)                     # sublane-aligned tiles
    if tb > 256:
        tb = (tb // 256) * 256
    tb = min(tb, B)
    sub_rows = min(tb, max(1, int(max_head_rows)))
    while tb % sub_rows:                               # sub_rows must divide tb
        sub_rows -= 1
    n_btiles = pl.cdiv(B, tb)

    # Block-diagonal 1/HW pooling matrix, reused for every chunk & batch tile.
    pool_mat = (jnp.repeat(jnp.eye(chunk_c, dtype=jnp.float32), HW, axis=0)
                / float(HW)).astype(stream_dtype)      # (chunk, chunk_c)
    w1t = jnp.transpose(w1).astype(jnp.float32)        # (C, G), VMEM-pinned
    w2f = jnp.asarray(w2, jnp.float32).reshape(1, G)   # (1, G), VMEM-pinned
    avg_arr = jnp.full(
        (1, 1), float(np.asarray(label_avg, np.float32).reshape(-1)[0]),
        jnp.float32)                                   # SMEM scalar

    # ---- (8,128)-padded VMEM footprint -> explicit scoped limit --------------
    def padded(r, c, isz):
        return _round_up(max(int(r), 1), 8) * _round_up(max(int(c), 1), 128) * isz

    need = (2 * padded(tb, chunk, itemsize)            # maps stream (dbl-buffered)
            + 2 * padded(chunk, chunk_c, itemsize)     # pooling matrix
            + 2 * padded(C, G, 4)                      # fc1^T
            + 2 * padded(1, G, 4)                      # fc2
            + 2 * padded(tb, n_cols, 4)                # fused output
            + n_chunks * padded(tb, chunk_c, 4))       # x_sun scratch
    vmem_limit = int(min(limit_cap, max(need * 5 // 4, 16 << 20)))

    kernel = functools.partial(_son_kernel, topks, n_chunks, sub_rows)

    grid_spec = pltpu.PrefetchScalarGridSpec(
        num_scalar_prefetch=0,
        grid=(n_btiles, n_chunks),
        in_specs=[
            pl.BlockSpec((tb, chunk), lambda i, k: (i, k)),       # maps (streamed)
            pl.BlockSpec((chunk, chunk_c), lambda i, k: (0, 0)),  # pool (pinned)
            pl.BlockSpec((C, G), lambda i, k: (0, 0)),            # fc1^T (pinned)
            pl.BlockSpec((1, G), lambda i, k: (0, 0)),            # fc2 (pinned)
            pl.BlockSpec(memory_space=pltpu.MemorySpace.SMEM),    # label_avg
        ],
        out_specs=pl.BlockSpec((tb, n_cols), lambda i, k: (i, 0)),
        scratch_shapes=[pltpu.VMEM((n_chunks, tb, chunk_c), jnp.float32)],
    )

    fused = pl.pallas_call(
        kernel,
        grid_spec=grid_spec,
        out_shape=jax.ShapeDtypeStruct((B, n_cols), jnp.float32),
        compiler_params=pltpu.CompilerParams(
            dimension_semantics=("parallel", "arbitrary"),
            vmem_limit_bytes=vmem_limit),
    )(maps_2d, pool_mat, w1t, w2f, avg_arr)

    x_sun = fused[:, :C]
    x_groups_log = fused[:, C:C + G]
    x_son = [fused[:, C + G + i:C + G + i + 1] for i in range(n_out)]
    return {"x_sun": x_sun, "x_son": x_son, "maps": maps_in,
            "x_groups_log": x_groups_log}


# ---------------------------------------------------------------------------
# Pure-JAX reference mirroring the PyTorch forward
# ---------------------------------------------------------------------------
def _reference(maps, w1, w2, label_avg, topks):
    x_sun = maps.astype(jnp.float32).mean(axis=(2, 3))
    x_prob = jnp.tanh(jnp.maximum(x_sun, 0.0) + EPS)
    xgl = jnp.log(x_prob) @ w1.astype(jnp.float32).T
    x_groups = jnp.exp(xgl) - EPS
    vote = x_groups * w2.astype(jnp.float32)
    avg = float(np.asarray(label_avg, np.float32).reshape(-1)[0])
    outs = []
    for k in topks:
        _, idx = lax.top_k(jnp.abs(vote), k)
        outs.append(jnp.take_along_axis(vote, idx, axis=1).sum(1, keepdims=True) + avg)
    outs.append(vote.sum(1, keepdims=True) + avg)
    return x_sun, xgl, outs


if __name__ == "__main__":
    # Small shapes consistent with the module: n_attributes=16 (C),
    # n_groups=32 (G), batch 16, 8x8 spatial maps.
    B, C, H, W, G = 16, 16, 8, 8, 32
    topks = [1, 2, 3, 4, 5, 6, 7, 8]
    label_avg = [4.472]

    key = jax.random.PRNGKey(0)
    k_maps, k_w1, k_w2 = jax.random.split(key, 3)
    # Keep the pooled means comfortably positive so log() is not evaluated in
    # its steep region (keeps the fp-tolerance check well-conditioned).
    maps = 1.0 + 0.5 * jax.random.normal(k_maps, (B, C, H, W), jnp.float32)

    # fc1 init as in __init__: relu(weight) row-normalized.
    w1 = jnp.maximum(
        jax.random.uniform(k_w1, (G, C), jnp.float32, minval=-1.0, maxval=1.0), 0.0)
    w1 = w1 / jnp.maximum(w1.sum(axis=1, keepdims=True), 1e-12)
    # __init__ zero-fills fc2.weight (every routed head would trivially equal
    # avg); use a random trained-like weight so the top-k routing is exercised.
    w2 = 0.5 * jax.random.normal(k_w2, (1, G), jnp.float32)

    def check(out, maps_used, rtol, atol):
        ref_x_sun, ref_xgl, ref_x_son = _reference(maps_used, w1, w2, label_avg, topks)
        np.testing.assert_allclose(np.asarray(out["x_sun"]), np.asarray(ref_x_sun),
                                   rtol=rtol, atol=atol)
        np.testing.assert_allclose(np.asarray(out["x_groups_log"]), np.asarray(ref_xgl),
                                   rtol=rtol, atol=atol)
        for got, want in zip(out["x_son"], ref_x_son):
            np.testing.assert_allclose(np.asarray(got), np.asarray(want),
                                       rtol=rtol, atol=atol)

    # 1) f32 stream, auto tiling.
    out = net_son_top_sin_reg(maps, w1, w2, label_avg, topks)
    jax.block_until_ready(out)
    check(out, maps, 1e-4, 1e-4)

    # 2) bf16 stream (half the HBM traffic on the dominant stream).
    maps_bf = maps.astype(jnp.bfloat16)
    out_bf = net_son_top_sin_reg(maps_bf, w1, w2, label_avg, topks)
    jax.block_until_ready(out_bf)
    check(out_bf, maps_bf, 2e-3, 2e-3)

    # 3) tiny tile budget: forces the chunked-CHW reduction axis plus multiple
    #    batch tiles (the code path used for CNN-sized maps).
    out_small = net_son_top_sin_reg(maps, w1, w2, label_avg, topks,
                                    max_tile_bytes=4096)
    jax.block_until_ready(out_small)
    check(out_small, maps, 1e-4, 1e-4)

    print("KERNEL_OK")
</pallas_src>

<mosaic_0001>
module attributes {stable_mosaic.version = 11 : i64} {
  func.func @_son_kernel(%arg0: i32, %arg1: i32, %arg2: memref<16x1024xf32, #tpu.memory_space<vmem>>, %arg3: memref<1024x16xf32, #tpu.memory_space<vmem>>, %arg4: memref<16x32xf32, #tpu.memory_space<vmem>>, %arg5: memref<1x32xf32, #tpu.memory_space<vmem>>, %arg6: memref<1x1xf32, #tpu.memory_space<smem>>, %arg7: memref<16x57xf32, #tpu.memory_space<vmem>>, %arg8: memref<1x16x16xf32, #tpu.memory_space<vmem>>) attributes {dimension_semantics = [#tpu.dimension_semantics<parallel>, #tpu.dimension_semantics<arbitrary>], iteration_bounds = array<i64: 1, 1>, scalar_prefetch = 0 : i64, scratch_operands = 1 : i64, tpu.core_type = #tpu.core_type<tc>, window_params = [{transform_indices = @transform_0, window_bounds = array<i64: 16, 1024>}, {pipeline_mode = #tpu.pipeline_mode<synchronous>, transform_indices = @transform_1, window_bounds = array<i64: 1024, 16>}, {pipeline_mode = #tpu.pipeline_mode<synchronous>, transform_indices = @transform_2, window_bounds = array<i64: 16, 32>}, {pipeline_mode = #tpu.pipeline_mode<synchronous>, transform_indices = @transform_3, window_bounds = array<i64: 1, 32>}, {transform_indices = @transform_4, window_bounds = array<i64: 1, 1>}, {transform_indices = @transform_5, window_bounds = array<i64: 16, 57>}]} {
    %c0 = arith.constant 0 : index
    %c0_0 = arith.constant 0 : index
    %0 = vector.load %arg2[%c0, %c0_0] : memref<16x1024xf32, #tpu.memory_space<vmem>>, vector<16x1024xf32>
    %c0_1 = arith.constant 0 : index
    %c0_2 = arith.constant 0 : index
    %1 = vector.load %arg3[%c0_1, %c0_2] : memref<1024x16xf32, #tpu.memory_space<vmem>>, vector<1024x16xf32>
    %cst = arith.constant dense<0.000000e+00> : vector<16x16xf32>
    %2 = tpu.matmul %0, %1, %cst {dimension_numbers = #tpu.dot_dimension_numbers<[1], [0], [0], [1], [0, 0, 1, 1], [], []>} : vector<16x1024xf32>, vector<1024x16xf32>, vector<16x16xf32> -> vector<16x16xf32>
    %3 = arith.index_cast %arg1 : i32 to index
    %c0_3 = arith.constant 0 : index
    %c0_4 = arith.constant 0 : index
    %4 = vector.load %arg8[%3, %c0_3, %c0_4] : memref<1x16x16xf32, #tpu.memory_space<vmem>>, vector<1x16x16xf32>
    %5 = vector.shape_cast %4 : vector<1x16x16xf32> to vector<16x16xf32>
    %6 = vector.shape_cast %2 : vector<16x16xf32> to vector<1x16x16xf32>
    tpu.vector_store %arg8[%3, %c0_3, %c0_4], %6 {strides = array<i32>} : memref<1x16x16xf32, #tpu.memory_space<vmem>>, vector<1x16x16xf32>,
    %c0_5 = arith.constant 0 : index
    %c0_6 = arith.constant 0 : index
    %7 = memref.load %arg6[%c0_5, %c0_6] : memref<1x1xf32, #tpu.memory_space<smem>>
    %c0_7 = arith.constant 0 : index
    %c0_8 = arith.constant 0 : index
    %8 = vector.load %arg4[%c0_7, %c0_8] : memref<16x32xf32, #tpu.memory_space<vmem>>, vector<16x32xf32>
    %c0_9 = arith.constant 0 : index
    %c0_10 = arith.constant 0 : index
    %9 = vector.load %arg5[%c0_9, %c0_10] : memref<1x32xf32, #tpu.memory_space<vmem>>, vector<1x32xf32>
    %c0_11 = arith.constant 0 : index
    %c0_12 = arith.constant 0 : index
    %c0_13 = arith.constant 0 : index
    %10 = vector.load %arg8[%c0_11, %c0_12, %c0_13] : memref<1x16x16xf32, #tpu.memory_space<vmem>>, vector<1x16x16xf32>
    %11 = vector.shape_cast %10 : vector<1x16x16xf32> to vector<16x16xf32>
    %cst_14 = arith.constant 0.000000e+00 : f32
    %12 = vector.broadcast %cst_14 : f32 to vector<16x16xf32>
    %13 = arith.maximumf %11, %12 : vector<16x16xf32>
    %cst_15 = arith.constant 9.99999993E-9 : f32
    %14 = vector.broadcast %cst_15 : f32 to vector<16x16xf32>
    %15 = arith.addf %13, %14 : vector<16x16xf32>
    %16 = math.tanh %15 : vector<16x16xf32>
    %17 = math.log %16 : vector<16x16xf32>
    %cst_16 = arith.constant dense<0.000000e+00> : vector<16x32xf32>
    %18 = tpu.matmul %17, %8, %cst_16 {dimension_numbers = #tpu.dot_dimension_numbers<[1], [0], [0], [1], [0, 0, 1, 1], [], []>} : vector<16x16xf32>, vector<16x32xf32>, vector<16x32xf32> -> vector<16x32xf32>
    %19 = math.exp %18 : vector<16x32xf32>
    %cst_17 = arith.constant 9.99999993E-9 : f32
    %20 = vector.broadcast %cst_17 : f32 to vector<16x32xf32>
    %21 = arith.subf %19, %20 : vector<16x32xf32>
    %22 = vector.broadcast %9 : vector<1x32xf32> to vector<16x32xf32>
    %23 = arith.mulf %21, %22 : vector<16x32xf32>
    %cst_18 = arith.constant dense<0.000000e+00> : vector<16xf32>
    %24 = vector.multi_reduction <add>, %23, %cst_18 [1] : vector<16x32xf32> to vector<16xf32>
    %25 = vector.shape_cast %24 : vector<16xf32> to vector<16x1xf32>
    %26 = tpu.iota {dimensions = array<i32: 1>} : vector<16x32xi32>
    %c2_i32 = arith.constant 2 : i32
    %27 = vector.broadcast %c2_i32 : i32 to vector<16x32xi32>
    %28 = arith.muli %26, %27 : vector<16x32xi32>
    %cst_19 = arith.constant 0.000000e+00 : f32
    %29 = vector.broadcast %cst_19 : f32 to vector<16x32xf32>
    %30 = arith.cmpf olt, %23, %29 : vector<16x32xf32>
    %31 = arith.extui %30 : vector<16x32xi1> to vector<16x32xi32>
    %32 = arith.addi %28, %31 : vector<16x32xi32>
    %33 = math.absf %23 : vector<16x32xf32>
    %cst_20 = arith.constant 0.000000e+00 : f32
    %34 = vector.broadcast %cst_20 : f32 to vector<16x1xf32>
    %cst_21 = arith.constant dense<0xFF800000> : vector<16xf32>
    %35 = vector.multi_reduction <maximumf>, %33, %cst_21 [1] : vector<16x32xf32> to vector<16xf32>
    %36 = vector.shape_cast %35 : vector<16xf32> to vector<16x1xf32>
    %37 = vector.broadcast %36 : vector<16x1xf32> to vector<16x32xf32>
    %38 = arith.cmpf oeq, %33, %37 : vector<16x32xf32>
    %c64_i32 = arith.constant 64 : i32
    %39 = vector.broadcast %c64_i32 : i32 to vector<16x32xi32>
    %40 = arith.select %38, %32, %39 : vector<16x32xi1>, vector<16x32xi32>
    %cst_22 = arith.constant dense<2147483647> : vector<16xi32>
    %41 = vector.multi_reduction <minsi>, %40, %cst_22 [1] : vector<16x32xi32> to vector<16xi32>
    %42 = vector.shape_cast %41 : vector<16xi32> to vector<16x1xi32>
    %c1_i32 = arith.constant 1 : i32
    %43 = vector.broadcast %c1_i32 : i32 to vector<16x1xi32>
    %44 = arith.andi %42, %43 : vector<16x1xi32>
    %45 = arith.sitofp %44 : vector<16x1xi32> to vector<16x1xf32>
    %cst_23 = arith.constant 2.000000e+00 : f32
    %46 = vector.broadcast %cst_23 : f32 to vector<16x1xf32>
    %47 = arith.mulf %46, %45 : vector<16x1xf32>
    %cst_24 = arith.constant 1.000000e+00 : f32
    %48 = vector.broadcast %cst_24 : f32 to vector<16x1xf32>
    %49 = arith.subf %48, %47 : vector<16x1xf32>
    %50 = arith.mulf %36, %49 : vector<16x1xf32>
    %51 = arith.addf %34, %50 : vector<16x1xf32>
    %c1_i32_25 = arith.constant 1 : i32
    %52 = vector.broadcast %c1_i32_25 : i32 to vector<16x1xi32>
    %53 = arith.shrsi %42, %52 : vector<16x1xi32>
    %54 = vector.broadcast %53 : vector<16x1xi32> to vector<16x32xi32>
    %55 = arith.cmpi eq, %26, %54 : vector<16x32xi32>
    %cst_26 = arith.constant -1.000000e+00 : f32
    %56 = vector.broadcast %cst_26 : f32 to vector<16x32xf32>
    %57 = arith.select %55, %56, %33 : vector<16x32xi1>, vector<16x32xf32>
    %cst_27 = arith.constant dense<0xFF800000> : vector<16xf32>
    %58 = vector.multi_reduction <maximumf>, %57, %cst_27 [1] : vector<16x32xf32> to vector<16xf32>
    %59 = vector.shape_cast %58 : vector<16xf32> to vector<16x1xf32>
    %60 = vector.broadcast %59 : vector<16x1xf32> to vector<16x32xf32>
    %61 = arith.cmpf oeq, %57, %60 : vector<16x32xf32>
    %c64_i32_28 = arith.constant 64 : i32
    %62 = vector.broadcast %c64_i32_28 : i32 to vector<16x32xi32>
    %63 = arith.select %61, %32, %62 : vector<16x32xi1>, vector<16x32xi32>
    %cst_29 = arith.constant dense<2147483647> : vector<16xi32>
    %64 = vector.multi_reduction <minsi>, %63, %cst_29 [1] : vector<16x32xi32> to vector<16xi32>
    %65 = vector.shape_cast %64 : vector<16xi32> to vector<16x1xi32>
    %c1_i32_30 = arith.constant 1 : i32
    %66 = vector.broadcast %c1_i32_30 : i32 to vector<16x1xi32>
    %67 = arith.andi %65, %66 : vector<16x1xi32>
    %68 = arith.sitofp %67 : vector<16x1xi32> to vector<16x1xf32>
    %cst_31 = arith.constant 2.000000e+00 : f32
    %69 = vector.broadcast %cst_31 : f32 to vector<16x1xf32>
    %70 = arith.mulf %69, %68 : vector<16x1xf32>
    %cst_32 = arith.constant 1.000000e+00 : f32
    %71 = vector.broadcast %cst_32 : f32 to vector<16x1xf32>
    %72 = arith.subf %71, %70 : vector<16x1xf32>
    %73 = arith.mulf %59, %72 : vector<16x1xf32>
    %74 = arith.addf %51, %73 : vector<16x1xf32>
    %c1_i32_33 = arith.constant 1 : i32
    %75 = vector.broadcast %c1_i32_33 : i32 to vector<16x1xi32>
    %76 = arith.shrsi %65, %75 : vector<16x1xi32>
    %77 = vector.broadcast %76 : vector<16x1xi32> to vector<16x32xi32>
    %78 = arith.cmpi eq, %26, %77 : vector<16x32xi32>
    %cst_34 = arith.constant -1.000000e+00 : f32
    %79 = vector.broadcast %cst_34 : f32 to vector<16x32xf32>
    %80 = arith.select %78, %79, %57 : vector<16x32xi1>, vector<16x32xf32>
    %cst_35 = arith.constant dense<0xFF800000> : vector<16xf32>
    %81 = vector.multi_reduction <maximumf>, %80, %cst_35 [1] : vector<16x32xf32> to vector<16xf32>
    %82 = vector.shape_cast %81 : vector<16xf32> to vector<16x1xf32>
    %83 = vector.broadcast %82 : vector<16x1xf32> to vector<16x32xf32>
    %84 = arith.cmpf oeq, %80, %83 : vector<16x32xf32>
    %c64_i32_36 = arith.constant 64 : i32
    %85 = vector.broadcast %c64_i32_36 : i32 to vector<16x32xi32>
    %86 = arith.select %84, %32, %85 : vector<16x32xi1>, vector<16x32xi32>
    %cst_37 = arith.constant dense<2147483647> : vector<16xi32>
    %87 = vector.multi_reduction <minsi>, %86, %cst_37 [1] : vector<16x32xi32> to vector<16xi32>
    %88 = vector.shape_cast %87 : vector<16xi32> to vector<16x1xi32>
    %c1_i32_38 = arith.constant 1 : i32
    %89 = vector.broadcast %c1_i32_38 : i32 to vector<16x1xi32>
    %90 = arith.andi %88, %89 : vector<16x1xi32>
    %91 = arith.sitofp %90 : vector<16x1xi32> to vector<16x1xf32>
    %cst_39 = arith.constant 2.000000e+00 : f32
    %92 = vector.broadcast %cst_39 : f32 to vector<16x1xf32>
    %93 = arith.mulf %92, %91 : vector<16x1xf32>
    %cst_40 = arith.constant 1.000000e+00 : f32
    %94 = vector.broadcast %cst_40 : f32 to vector<16x1xf32>
    %95 = arith.subf %94, %93 : vector<16x1xf32>
    %96 = arith.mulf %82, %95 : vector<16x1xf32>
    %97 = arith.addf %74, %96 : vector<16x1xf32>
    %c1_i32_41 = arith.constant 1 : i32
    %98 = vector.broadcast %c1_i32_41 : i32 to vector<16x1xi32>
    %99 = arith.shrsi %88, %98 : vector<16x1xi32>
    %100 = vector.broadcast %99 : vector<16x1xi32> to vector<16x32xi32>
    %101 = arith.cmpi eq, %26, %100 : vector<16x32xi32>
    %cst_42 = arith.constant -1.000000e+00 : f32
    %102 = vector.broadcast %cst_42 : f32 to vector<16x32xf32>
    %103 = arith.select %101, %102, %80 : vector<16x32xi1>, vector<16x32xf32>
    %cst_43 = arith.constant dense<0xFF800000> : vector<16xf32>
    %104 = vector.multi_reduction <maximumf>, %103, %cst_43 [1] : vector<16x32xf32> to vector<16xf32>
    %105 = vector.shape_cast %104 : vector<16xf32> to vector<16x1xf32>
    %106 = vector.broadcast %105 : vector<16x1xf32> to vector<16x32xf32>
    %107 = arith.cmpf oeq, %103, %106 : vector<16x32xf32>
    %c64_i32_44 = arith.constant 64 : i32
    %108 = vector.broadcast %c64_i32_44 : i32 to vector<16x32xi32>
    %109 = arith.select %107, %32, %108 : vector<16x32xi1>, vector<16x32xi32>
    %cst_45 = arith.constant dense<2147483647> : vector<16xi32>
    %110 = vector.multi_reduction <minsi>, %109, %cst_45 [1] : vector<16x32xi32> to vector<16xi32>
    %111 = vector.shape_cast %110 : vector<16xi32> to vector<16x1xi32>
    %c1_i32_46 = arith.constant 1 : i32
    %112 = vector.broadcast %c1_i32_46 : i32 to vector<16x1xi32>
    %113 = arith.andi %111, %112 : vector<16x1xi32>
    %114 = arith.sitofp %113 : vector<16x1xi32> to vector<16x1xf32>
    %cst_47 = arith.constant 2.000000e+00 : f32
    %115 = vector.broadcast %cst_47 : f32 to vector<16x1xf32>
    %116 = arith.mulf %115, %114 : vector<16x1xf32>
    %cst_48 = arith.constant 1.000000e+00 : f32
    %117 = vector.broadcast %cst_48 : f32 to vector<16x1xf32>
    %118 = arith.subf %117, %116 : vector<16x1xf32>
    %119 = arith.mulf %105, %118 : vector<16x1xf32>
    %120 = arith.addf %97, %119 : vector<16x1xf32>
    %c1_i32_49 = arith.constant 1 : i32
    %121 = vector.broadcast %c1_i32_49 : i32 to vector<16x1xi32>
    %122 = arith.shrsi %111, %121 : vector<16x1xi32>
    %123 = vector.broadcast %122 : vector<16x1xi32> to vector<16x32xi32>
    %124 = arith.cmpi eq, %26, %123 : vector<16x32xi32>
    %cst_50 = arith.constant -1.000000e+00 : f32
    %125 = vector.broadcast %cst_50 : f32 to vector<16x32xf32>
    %126 = arith.select %124, %125, %103 : vector<16x32xi1>, vector<16x32xf32>
    %cst_51 = arith.constant dense<0xFF800000> : vector<16xf32>
    %127 = vector.multi_reduction <maximumf>, %126, %cst_51 [1] : vector<16x32xf32> to vector<16xf32>
    %128 = vector.shape_cast %127 : vector<16xf32> to vector<16x1xf32>
    %129 = vector.broadcast %128 : vector<16x1xf32> to vector<16x32xf32>
    %130 = arith.cmpf oeq, %126, %129 : vector<16x32xf32>
    %c64_i32_52 = arith.constant 64 : i32
    %131 = vector.broadcast %c64_i32_52 : i32 to vector<16x32xi32>
    %132 = arith.select %130, %32, %131 : vector<16x32xi1>, vector<16x32xi32>
    %cst_53 = arith.constant dense<2147483647> : vector<16xi32>
    %133 = vector.multi_reduction <minsi>, %132, %cst_53 [1] : vector<16x32xi32> to vector<16xi32>
    %134 = vector.shape_cast %133 : vector<16xi32> to vector<16x1xi32>
    %c1_i32_54 = arith.constant 1 : i32
    %135 = vector.broadcast %c1_i32_54 : i32 to vector<16x1xi32>
    %136 = arith.andi %134, %135 : vector<16x1xi32>
    %137 = arith.sitofp %136 : vector<16x1xi32> to vector<16x1xf32>
    %cst_55 = arith.constant 2.000000e+00 : f32
    %138 = vector.broadcast %cst_55 : f32 to vector<16x1xf32>
    %139 = arith.mulf %138, %137 : vector<16x1xf32>
    %cst_56 = arith.constant 1.000000e+00 : f32
    %140 = vector.broadcast %cst_56 : f32 to vector<16x1xf32>
    %141 = arith.subf %140, %139 : vector<16x1xf32>
    %142 = arith.mulf %128, %141 : vector<16x1xf32>
    %143 = arith.addf %120, %142 : vector<16x1xf32>
    %c1_i32_57 = arith.constant 1 : i32
    %144 = vector.broadcast %c1_i32_57 : i32 to vector<16x1xi32>
    %145 = arith.shrsi %134, %144 : vector<16x1xi32>
    %146 = vector.broadcast %145 : vector<16x1xi32> to vector<16x32xi32>
    %147 = arith.cmpi eq, %26, %146 : vector<16x32xi32>
    %cst_58 = arith.constant -1.000000e+00 : f32
    %148 = vector.broadcast %cst_58 : f32 to vector<16x32xf32>
    %149 = arith.select %147, %148, %126 : vector<16x32xi1>, vector<16x32xf32>
    %cst_59 = arith.constant dense<0xFF800000> : vector<16xf32>
    %150 = vector.multi_reduction <maximumf>, %149, %cst_59 [1] : vector<16x32xf32> to vector<16xf32>
    %151 = vector.shape_cast %150 : vector<16xf32> to vector<16x1xf32>
    %152 = vector.broadcast %151 : vector<16x1xf32> to vector<16x32xf32>
    %153 = arith.cmpf oeq, %149, %152 : vector<16x32xf32>
    %c64_i32_60 = arith.constant 64 : i32
    %154 = vector.broadcast %c64_i32_60 : i32 to vector<16x32xi32>
    %155 = arith.select %153, %32, %154 : vector<16x32xi1>, vector<16x32xi32>
    %cst_61 = arith.constant dense<2147483647> : vector<16xi32>
    %156 = vector.multi_reduction <minsi>, %155, %cst_61 [1] : vector<16x32xi32> to vector<16xi32>
    %157 = vector.shape_cast %156 : vector<16xi32> to vector<16x1xi32>
    %c1_i32_62 = arith.constant 1 : i32
    %158 = vector.broadcast %c1_i32_62 : i32 to vector<16x1xi32>
    %159 = arith.andi %157, %158 : vector<16x1xi32>
    %160 = arith.sitofp %159 : vector<16x1xi32> to vector<16x1xf32>
    %cst_63 = arith.constant 2.000000e+00 : f32
    %161 = vector.broadcast %cst_63 : f32 to vector<16x1xf32>
    %162 = arith.mulf %161, %160 : vector<16x1xf32>
    %cst_64 = arith.constant 1.000000e+00 : f32
    %163 = vector.broadcast %cst_64 : f32 to vector<16x1xf32>
    %164 = arith.subf %163, %162 : vector<16x1xf32>
    %165 = arith.mulf %151, %164 : vector<16x1xf32>
    %166 = arith.addf %143, %165 : vector<16x1xf32>
    %c1_i32_65 = arith.constant 1 : i32
    %167 = vector.broadcast %c1_i32_65 : i32 to vector<16x1xi32>
    %168 = arith.shrsi %157, %167 : vector<16x1xi32>
    %169 = vector.broadcast %168 : vector<16x1xi32> to vector<16x32xi32>
    %170 = arith.cmpi eq, %26, %169 : vector<16x32xi32>
    %cst_66 = arith.constant -1.000000e+00 : f32
    %171 = vector.broadcast %cst_66 : f32 to vector<16x32xf32>
    %172 = arith.select %170, %171, %149 : vector<16x32xi1>, vector<16x32xf32>
    %cst_67 = arith.constant dense<0xFF800000> : vector<16xf32>
    %173 = vector.multi_reduction <maximumf>, %172, %cst_67 [1] : vector<16x32xf32> to vector<16xf32>
    %174 = vector.shape_cast %173 : vector<16xf32> to vector<16x1xf32>
    %175 = vector.broadcast %174 : vector<16x1xf32> to vector<16x32xf32>
    %176 = arith.cmpf oeq, %172, %175 : vector<16x32xf32>
    %c64_i32_68 = arith.constant 64 : i32
    %177 = vector.broadcast %c64_i32_68 : i32 to vector<16x32xi32>
    %178 = arith.select %176, %32, %177 : vector<16x32xi1>, vector<16x32xi32>
    %cst_69 = arith.constant dense<2147483647> : vector<16xi32>
    %179 = vector.multi_reduction <minsi>, %178, %cst_69 [1] : vector<16x32xi32> to vector<16xi32>
    %180 = vector.shape_cast %179 : vector<16xi32> to vector<16x1xi32>
    %c1_i32_70 = arith.constant 1 : i32
    %181 = vector.broadcast %c1_i32_70 : i32 to vector<16x1xi32>
    %182 = arith.andi %180, %181 : vector<16x1xi32>
    %183 = arith.sitofp %182 : vector<16x1xi32> to vector<16x1xf32>
    %cst_71 = arith.constant 2.000000e+00 : f32
    %184 = vector.broadcast %cst_71 : f32 to vector<16x1xf32>
    %185 = arith.mulf %184, %183 : vector<16x1xf32>
    %cst_72 = arith.constant 1.000000e+00 : f32
    %186 = vector.broadcast %cst_72 : f32 to vector<16x1xf32>
    %187 = arith.subf %186, %185 : vector<16x1xf32>
    %188 = arith.mulf %174, %187 : vector<16x1xf32>
    %189 = arith.addf %166, %188 : vector<16x1xf32>
    %c1_i32_73 = arith.constant 1 : i32
    %190 = vector.broadcast %c1_i32_73 : i32 to vector<16x1xi32>
    %191 = arith.shrsi %180, %190 : vector<16x1xi32>
    %192 = vector.broadcast %191 : vector<16x1xi32> to vector<16x32xi32>
    %193 = arith.cmpi eq, %26, %192 : vector<16x32xi32>
    %cst_74 = arith.constant -1.000000e+00 : f32
    %194 = vector.broadcast %cst_74 : f32 to vector<16x32xf32>
    %195 = arith.select %193, %194, %172 : vector<16x32xi1>, vector<16x32xf32>
    %cst_75 = arith.constant dense<0xFF800000> : vector<16xf32>
    %196 = vector.multi_reduction <maximumf>, %195, %cst_75 [1] : vector<16x32xf32> to vector<16xf32>
    %197 = vector.shape_cast %196 : vector<16xf32> to vector<16x1xf32>
    %198 = vector.broadcast %197 : vector<16x1xf32> to vector<16x32xf32>
    %199 = arith.cmpf oeq, %195, %198 : vector<16x32xf32>
    %c64_i32_76 = arith.constant 64 : i32
    %200 = vector.broadcast %c64_i32_76 : i32 to vector<16x32xi32>
    %201 = arith.select %199, %32, %200 : vector<16x32xi1>, vector<16x32xi32>
    %cst_77 = arith.constant dense<2147483647> : vector<16xi32>
    %202 = vector.multi_reduction <minsi>, %201, %cst_77 [1] : vector<16x32xi32> to vector<16xi32>
    %203 = vector.shape_cast %202 : vector<16xi32> to vector<16x1xi32>
    %c1_i32_78 = arith.constant 1 : i32
    %204 = vector.broadcast %c1_i32_78 : i32 to vector<16x1xi32>
    %205 = arith.andi %203, %204 : vector<16x1xi32>
    %206 = arith.sitofp %205 : vector<16x1xi32> to vector<16x1xf32>
    %cst_79 = arith.constant 2.000000e+00 : f32
    %207 = vector.broadcast %cst_79 : f32 to vector<16x1xf32>
    %208 = arith.mulf %207, %206 : vector<16x1xf32>
    %cst_80 = arith.constant 1.000000e+00 : f32
    %209 = vector.broadcast %cst_80 : f32 to vector<16x1xf32>
    %210 = arith.subf %209, %208 : vector<16x1xf32>
    %211 = arith.mulf %197, %210 : vector<16x1xf32>
    %212 = arith.addf %189, %211 : vector<16x1xf32>
    %213 = vector.broadcast %7 : f32 to vector<16x1xf32>
    %214 = arith.addf %51, %213 : vector<16x1xf32>
    %215 = vector.broadcast %7 : f32 to vector<16x1xf32>
    %216 = arith.addf %74, %215 : vector<16x1xf32>
    %217 = vector.broadcast %7 : f32 to vector<16x1xf32>
    %218 = arith.addf %97, %217 : vector<16x1xf32>
    %219 = vector.broadcast %7 : f32 to vector<16x1xf32>
    %220 = arith.addf %120, %219 : vector<16x1xf32>
    %221 = vector.broadcast %7 : f32 to vector<16x1xf32>
    %222 = arith.addf %143, %221 : vector<16x1xf32>
    %223 = vector.broadcast %7 : f32 to vector<16x1xf32>
    %224 = arith.addf %166, %223 : vector<16x1xf32>
    %225 = vector.broadcast %7 : f32 to vector<16x1xf32>
    %226 = arith.addf %189, %225 : vector<16x1xf32>
    %227 = vector.broadcast %7 : f32 to vector<16x1xf32>
    %228 = arith.addf %212, %227 : vector<16x1xf32>
    %229 = vector.broadcast %7 : f32 to vector<16x1xf32>
    %230 = arith.addf %25, %229 : vector<16x1xf32>
    %231 = tpu.concatenate %11, %18, %214, %216, %218, %220, %222, %224, %226, %228, %230 in 1 : vector<16x16xf32>, vector<16x32xf32>, vector<16x1xf32>, vector<16x1xf32>, vector<16x1xf32>, vector<16x1xf32>, vector<16x1xf32>, vector<16x1xf32>, vector<16x1xf32>, vector<16x1xf32>, vector<16x1xf32> -> vector<16x57xf32>
    %c0_81 = arith.constant 0 : index
    %c0_82 = arith.constant 0 : index
    %232 = vector.load %arg7[%c0_81, %c0_82] : memref<16x57xf32, #tpu.memory_space<vmem>>, vector<16x57xf32>
    tpu.vector_store %arg7[%c0_81, %c0_82], %231 {strides = array<i32>} : memref<16x57xf32, #tpu.memory_space<vmem>>, vector<16x57xf32>,
    return
  }
  func.func @transform_0(%arg0: i32, %arg1: i32) -> (i32, i32) {
    %c0_i32 = arith.constant 0 : i32
    return %arg0, %arg1 : i32, i32
  }
  func.func @transform_1(%arg0: i32, %arg1: i32) -> (i32, i32) {
    %c0_i32 = arith.constant 0 : i32
    %c0_i32_0 = arith.constant 0 : i32
    %c0_i32_1 = arith.constant 0 : i32
    return %c0_i32, %c0_i32_0 : i32, i32
  }
  func.func @transform_2(%arg0: i32, %arg1: i32) -> (i32, i32) {
    %c0_i32 = arith.constant 0 : i32
    %c0_i32_0 = arith.constant 0 : i32
    %c0_i32_1 = arith.constant 0 : i32
    return %c0_i32, %c0_i32_0 : i32, i32
  }
  func.func @transform_3(%arg0: i32, %arg1: i32) -> (i32, i32) {
    %c0_i32 = arith.constant 0 : i32
    %c0_i32_0 = arith.constant 0 : i32
    %c0_i32_1 = arith.constant 0 : i32
    return %c0_i32, %c0_i32_0 : i32, i32
  }
  func.func @transform_4(%arg0: i32, %arg1: i32) -> (i32, i32) {
    %c0_i32 = arith.constant 0 : i32
    %c0_i32_0 = arith.constant 0 : i32
    %c0_i32_1 = arith.constant 0 : i32
    return %c0_i32, %c0_i32_0 : i32, i32
  }
  func.func @transform_5(%arg0: i32, %arg1: i32) -> (i32, i32) {
    %c0_i32 = arith.constant 0 : i32
    %c0_i32_0 = arith.constant 0 : i32
    return %arg0, %c0_i32 : i32, i32
  }
}

</mosaic_0001>

<llo_original>
// kernel: tpu_custom_call.1
$region0: #{tpu_custom_call.1}
  #allocation0 [shape = 'u32[]', space=smem, size = 0x4, offset = 0x4, fixed_abs, tag = 'smem constant byte address 0x4 - core index']
  #allocation1 [shape = 'u32[144,128]{1,0:T(1,128)}', space=vmem, size = 0x12000, scoped, tag = 'internal scratch']
  #allocation2 [shape = 'f32[1,16,16]{2,1,0:T(8,128)}', space=vmem, size = 0x2000, scoped, tag = 'scratch operand']
  #allocation3 [shape = 'f32[1,1]{1,0:T(1,128)S(6)}', space=smem, size = 0x200, scoped, tag = 'scoped memory for tpu_custom_call.1']
  %s0 = inlined_call_operand.vmem [shape: f32[16,1024], index: 0, kind: input, shape index: {}]
  %s1 = inlined_call_operand.vmem [shape: f32[1024,16], index: 1, kind: input, shape index: {}]
  %s2 = inlined_call_operand.vmem [shape: f32[16,32], index: 2, kind: input, shape index: {}]
  %s3 = inlined_call_operand.vmem [shape: f32[1,32], index: 3, kind: input, shape index: {}]
  %s4 = inlined_call_operand.<no memory space> [shape: f32[1,1], index: 4, kind: input, shape index: {}]
  %s5 = inlined_call_operand.hbm [shape: f32[16,57], index: 5, kind: output, shape index: {}]
  %s6 = sld [smem:[#allocation0]]
  $region30: #{tpu_custom_call.1} parent=0
    _
  %s8 = ssub.s32 1, %s6
  %s9 = scalar_select 0, %s8, %s6
  %10 = sst [smem:[#allocation3]] %s4
  $region1: #{tpu_custom_call.1} parent=0
    #allocation4 [shape = 'u8[8192]{0}', space=vmem, size = 0x2000, scoped, tag = 'output window, operand 0, single buffered']
    #allocation5 [shape = 's32[1]{0}', space=sflag, size = 0x4, scoped, tag = 'scoped memory for tpu_custom_call.1']
    %11 = vsyncpa [#allocation5], 0
    // Predicated region
    $region2: #{tpu_custom_call.1} parent=1 // pred_check
      _
    $region3: #{tpu_custom_call.1} parent=1 // pred_check_branch
      %13 = sbr.rel (0) target = $region5
    $region4: #{tpu_custom_call.1} parent=1 // pred_region
      _
    $region5: #{tpu_custom_call.1} parent=1 // pred_fallthru
      _
    // Predicated region
    $region6: #{tpu_custom_call.1} parent=1 // pred_check
      _
    $region7: #{tpu_custom_call.1} parent=1 // pred_check_branch
      %15 = sbr.rel (0) target = $region9
    $region8: #{tpu_custom_call.1} parent=1 // pred_region
      _
    $region9: #{tpu_custom_call.1} parent=1 // pred_fallthru
      _
    // Predicated region
    $region10: #{tpu_custom_call.1} parent=1 // pred_check
      _
    $region11: #{tpu_custom_call.1} parent=1 // pred_check_branch
      %17 = sbr.rel (0) target = $region13
    $region12: #{tpu_custom_call.1} parent=1 // pred_region
      _
    $region13: #{tpu_custom_call.1} parent=1 // pred_fallthru
      _
    // Predicated region
    $region14: #{tpu_custom_call.1} parent=1 // pred_check
      _
    $region15: #{tpu_custom_call.1} parent=1 // pred_check_branch
      %19 = sbr.rel (0) target = $region17
    $region16: #{tpu_custom_call.1} parent=1 // pred_region
      _
    $region17: #{tpu_custom_call.1} parent=1 // pred_fallthru
      _
    // Predicated region
    $region18: #{tpu_custom_call.1} parent=1 // pred_check
      _
    $region19: #{tpu_custom_call.1} parent=1 // pred_check_branch
      %21 = sbr.rel (0) target = $region21
    $region20: #{tpu_custom_call.1} parent=1 // pred_region
      _
    $region21: #{tpu_custom_call.1} parent=1 // pred_fallthru
      _
    %v22 = vld [vmem:[%s0] sm:$0xff]
    %v23 = vld [vmem:[%s0 + $0x8] sm:$0xff]
    %v24 = vld [vmem:[%s0 + $0x10] sm:$0xff]
    %v25 = vld [vmem:[%s0 + $0x18] sm:$0xff]
    %v26 = vld [vmem:[%s0 + $0x20] sm:$0xff]
    %v27 = vld [vmem:[%s0 + $0x28] sm:$0xff]
    %v28 = vld [vmem:[%s0 + $0x30] sm:$0xff]
    %v29 = vld [vmem:[%s0 + $0x38] sm:$0xff]
    %v30 = vld [vmem:[%s0 + $0x40] sm:$0xff]
    %v31 = vld [vmem:[%s0 + $0x48] sm:$0xff]
    %v32 = vld [vmem:[%s0 + $0x50] sm:$0xff]
    %v33 = vld [vmem:[%s0 + $0x58] sm:$0xff]
    %v34 = vld [vmem:[%s0 + $0x60] sm:$0xff]
    %v35 = vld [vmem:[%s0 + $0x68] sm:$0xff]
    %v36 = vld [vmem:[%s0 + $0x70] sm:$0xff]
    %v37 = vld [vmem:[%s0 + $0x78] sm:$0xff]
    %v38 = vld [vmem:[%s1] sm:$0xff]
    %v39 = vld [vmem:[%s1 + $0x8] sm:$0xff]
    %v40 = vld [vmem:[%s1 + $0x10] sm:$0xff]
    %v41 = vld [vmem:[%s1 + $0x18] sm:$0xff]
    %v42 = vld [vmem:[%s1 + $0x20] sm:$0xff]
    %v43 = vld [vmem:[%s1 + $0x28] sm:$0xff]
    %v44 = vld [vmem:[%s1 + $0x30] sm:$0xff]
    %v45 = vld [vmem:[%s1 + $0x38] sm:$0xff]
    %v46 = vld [vmem:[%s1 + $0x40] sm:$0xff]
    %v47 = vld [vmem:[%s1 + $0x48] sm:$0xff]
    %v48 = vld [vmem:[%s1 + $0x50] sm:$0xff]
    %v49 = vld [vmem:[%s1 + $0x58] sm:$0xff]
    %v50 = vld [vmem:[%s1 + $0x60] sm:$0xff]
    %v51 = vld [vmem:[%s1 + $0x68] sm:$0xff]
    %v52 = vld [vmem:[%s1 + $0x70] sm:$0xff]
    %v53 = vld [vmem:[%s1 + $0x78] sm:$0xff]
    %v54 = vld [vmem:[%s1 + $0x80] sm:$0xff]
    %v55 = vld [vmem:[%s1 + $0x88] sm:$0xff]
    %v56 = vld [vmem:[%s1 + $0x90] sm:$0xff]
    %v57 = vld [vmem:[%s1 + $0x98] sm:$0xff]
    %v58 = vld [vmem:[%s1 + $0xa0] sm:$0xff]
    %v59 = vld [vmem:[%s1 + $0xa8] sm:$0xff]
    %v60 = vld [vmem:[%s1 + $0xb0] sm:$0xff]
    %v61 = vld [vmem:[%s1 + $0xb8] sm:$0xff]
    %v62 = vld [vmem:[%s1 + $0xc0] sm:$0xff]
    %v63 = vld [vmem:[%s1 + $0xc8] sm:$0xff]
    %v64 = vld [vmem:[%s1 + $0xd0] sm:$0xff]
    %v65 = vld [vmem:[%s1 + $0xd8] sm:$0xff]
    %v66 = vld [vmem:[%s1 + $0xe0] sm:$0xff]
    %v67 = vld [vmem:[%s1 + $0xe8] sm:$0xff]
    %v68 = vld [vmem:[%s1 + $0xf0] sm:$0xff]
    %v69 = vld [vmem:[%s1 + $0xf8] sm:$0xff]
    %v70 = vld [vmem:[%s1 + $0x100] sm:$0xff]
    %v71 = vld [vmem:[%s1 + $0x108] sm:$0xff]
    %v72 = vld [vmem:[%s1 + $0x110] sm:$0xff]
    %v73 = vld [vmem:[%s1 + $0x118] sm:$0xff]
    %v74 = vld [vmem:[%s1 + $0x120] sm:$0xff]
    %v75 = vld [vmem:[%s1 + $0x128] sm:$0xff]
    %v76 = vld [vmem:[%s1 + $0x130] sm:$0xff]
    %v77 = vld [vmem:[%s1 + $0x138] sm:$0xff]
    %v78 = vld [vmem:[%s1 + $0x140] sm:$0xff]
    %v79 = vld [vmem:[%s1 + $0x148] sm:$0xff]
    %v80 = vld [vmem:[%s1 + $0x150] sm:$0xff]
    %v81 = vld [vmem:[%s1 + $0x158] sm:$0xff]
    %v82 = vld [vmem:[%s1 + $0x160] sm:$0xff]
    %v83 = vld [vmem:[%s1 + $0x168] sm:$0xff]
    %v84 = vld [vmem:[%s1 + $0x170] sm:$0xff]
    %v85 = vld [vmem:[%s1 + $0x178] sm:$0xff]
    %v86 = vld [vmem:[%s1 + $0x180] sm:$0xff]
    %v87 = vld [vmem:[%s1 + $0x188] sm:$0xff]
    %v88 = vld [vmem:[%s1 + $0x190] sm:$0xff]
    %v89 = vld [vmem:[%s1 + $0x198] sm:$0xff]
    %v90 = vld [vmem:[%s1 + $0x1a0] sm:$0xff]
    %v91 = vld [vmem:[%s1 + $0x1a8] sm:$0xff]
    %v92 = vld [vmem:[%s1 + $0x1b0] sm:$0xff]
    %v93 = vld [vmem:[%s1 + $0x1b8] sm:$0xff]
    %v94 = vld [vmem:[%s1 + $0x1c0] sm:$0xff]
    %v95 = vld [vmem:[%s1 + $0x1c8] sm:$0xff]
    %v96 = vld [vmem:[%s1 + $0x1d0] sm:$0xff]
    %v97 = vld [vmem:[%s1 + $0x1d8] sm:$0xff]
    %v98 = vld [vmem:[%s1 + $0x1e0] sm:$0xff]
    %v99 = vld [vmem:[%s1 + $0x1e8] sm:$0xff]
    %v100 = vld [vmem:[%s1 + $0x1f0] sm:$0xff]
    %v101 = vld [vmem:[%s1 + $0x1f8] sm:$0xff]
    %v102 = vld [vmem:[%s1 + $0x200] sm:$0xff]
    %v103 = vld [vmem:[%s1 + $0x208] sm:$0xff]
    %v104 = vld [vmem:[%s1 + $0x210] sm:$0xff]
    %v105 = vld [vmem:[%s1 + $0x218] sm:$0xff]
    %v106 = vld [vmem:[%s1 + $0x220] sm:$0xff]
    %v107 = vld [vmem:[%s1 + $0x228] sm:$0xff]
    %v108 = vld [vmem:[%s1 + $0x230] sm:$0xff]
    %v109 = vld [vmem:[%s1 + $0x238] sm:$0xff]
    %v110 = vld [vmem:[%s1 + $0x240] sm:$0xff]
    %v111 = vld [vmem:[%s1 + $0x248] sm:$0xff]
    %v112 = vld [vmem:[%s1 + $0x250] sm:$0xff]
    %v113 = vld [vmem:[%s1 + $0x258] sm:$0xff]
    %v114 = vld [vmem:[%s1 + $0x260] sm:$0xff]
    %v115 = vld [vmem:[%s1 + $0x268] sm:$0xff]
    %v116 = vld [vmem:[%s1 + $0x270] sm:$0xff]
    %v117 = vld [vmem:[%s1 + $0x278] sm:$0xff]
    %v118 = vld [vmem:[%s1 + $0x280] sm:$0xff]
    %v119 = vld [vmem:[%s1 + $0x288] sm:$0xff]
    %v120 = vld [vmem:[%s1 + $0x290] sm:$0xff]
    %v121 = vld [vmem:[%s1 + $0x298] sm:$0xff]
    %v122 = vld [vmem:[%s1 + $0x2a0] sm:$0xff]
    %v123 = vld [vmem:[%s1 + $0x2a8] sm:$0xff]
    %v124 = vld [vmem:[%s1 + $0x2b0] sm:$0xff]
    %v125 = vld [vmem:[%s1 + $0x2b8] sm:$0xff]
    %v126 = vld [vmem:[%s1 + $0x2c0] sm:$0xff]
    %v127 = vld [vmem:[%s1 + $0x2c8] sm:$0xff]
    %v128 = vld [vmem:[%s1 + $0x2d0] sm:$0xff]
    %v129 = vld [vmem:[%s1 + $0x2d8] sm:$0xff]
    %v130 = vld [vmem:[%s1 + $0x2e0] sm:$0xff]
    %v131 = vld [vmem:[%s1 + $0x2e8] sm:$0xff]
    %v132 = vld [vmem:[%s1 + $0x2f0] sm:$0xff]
    %v133 = vld [vmem:[%s1 + $0x2f8] sm:$0xff]
    %v134 = vld [vmem:[%s1 + $0x300] sm:$0xff]
    %v135 = vld [vmem:[%s1 + $0x308] sm:$0xff]
    %v136 = vld [vmem:[%s1 + $0x310] sm:$0xff]
    %v137 = vld [vmem:[%s1 + $0x318] sm:$0xff]
    %v138 = vld [vmem:[%s1 + $0x320] sm:$0xff]
    %v139 = vld [vmem:[%s1 + $0x328] sm:$0xff]
    %v140 = vld [vmem:[%s1 + $0x330] sm:$0xff]
    %v141 = vld [vmem:[%s1 + $0x338] sm:$0xff]
    %v142 = vld [vmem:[%s1 + $0x340] sm:$0xff]
    %v143 = vld [vmem:[%s1 + $0x348] sm:$0xff]
    %v144 = vld [vmem:[%s1 + $0x350] sm:$0xff]
    %v145 = vld [vmem:[%s1 + $0x358] sm:$0xff]
    %v146 = vld [vmem:[%s1 + $0x360] sm:$0xff]
    %v147 = vld [vmem:[%s1 + $0x368] sm:$0xff]
    %v148 = vld [vmem:[%s1 + $0x370] sm:$0xff]
    %v149 = vld [vmem:[%s1 + $0x378] sm:$0xff]
    %v150 = vld [vmem:[%s1 + $0x380] sm:$0xff]
    %v151 = vld [vmem:[%s1 + $0x388] sm:$0xff]
    %v152 = vld [vmem:[%s1 + $0x390] sm:$0xff]
    %v153 = vld [vmem:[%s1 + $0x398] sm:$0xff]
    %v154 = vld [vmem:[%s1 + $0x3a0] sm:$0xff]
    %v155 = vld [vmem:[%s1 + $0x3a8] sm:$0xff]
    %v156 = vld [vmem:[%s1 + $0x3b0] sm:$0xff]
    %v157 = vld [vmem:[%s1 + $0x3b8] sm:$0xff]
    %v158 = vld [vmem:[%s1 + $0x3c0] sm:$0xff]
    %v159 = vld [vmem:[%s1 + $0x3c8] sm:$0xff]
    %v160 = vld [vmem:[%s1 + $0x3d0] sm:$0xff]
    %v161 = vld [vmem:[%s1 + $0x3d8] sm:$0xff]
    %v162 = vld [vmem:[%s1 + $0x3e0] sm:$0xff]
    %v163 = vld [vmem:[%s1 + $0x3e8] sm:$0xff]
    %v164 = vld [vmem:[%s1 + $0x3f0] sm:$0xff]
    %v165 = vld [vmem:[%s1 + $0x3f8] sm:$0xff]
    %166 = vmatprep.subr.mxu0 0.0
    %167 = vmatpush1.msra.mxu0 %v53
    %168 = vmatprep.subr.mxu0 0.0
    %169 = vmatpush1.msra.mxu0 %v52
    %170 = vmatprep.subr.mxu0 0.0
    %171 = vmatpush1.msra.mxu0 %v51
    %172 = vmatprep.subr.mxu0 0.0
    %173 = vmatpush1.msra.mxu0 %v50
    %174 = vmatprep.subr.mxu0 0.0
    %175 = vmatpush1.msra.mxu0 %v49
    %176 = vmatprep.subr.mxu0 0.0
    %177 = vmatpush1.msra.mxu0 %v48
    %178 = vmatprep.subr.mxu0 0.0
    %179 = vmatpush1.msra.mxu0 %v47
    %180 = vmatprep.subr.mxu0 0.0
    %181 = vmatpush1.msra.mxu0 %v46
    %182 = vmatprep.subr.mxu0 0.0
    %183 = vmatpush1.msra.mxu0 %v45
    %184 = vmatprep.subr.mxu0 0.0
    %185 = vmatpush1.msra.mxu0 %v44
    %186 = vmatprep.subr.mxu0 0.0
    %187 = vmatpush1.msra.mxu0 %v43
    %188 = vmatprep.subr.mxu0 0.0
    %189 = vmatpush1.msra.mxu0 %v42
    %190 = vmatprep.subr.mxu0 0.0
    %191 = vmatpush1.msra.mxu0 %v41
    %192 = vmatprep.subr.mxu0 0.0
    %193 = vmatpush1.msra.mxu0 %v40
    %194 = vmatprep.subr.mxu0 0.0
    %195 = vmatpush1.msra.mxu0 %v39
    %196 = vmatprep.subr.mxu0 0.0
    %197 = vmatpush1.msra.mxu0 %v38
    %198 = vmatprep.subr.mxu0 0.0
    %199 = vmatpush2.msra.mxu0 %v69
    %200 = vmatprep.subr.mxu0 0.0
    %201 = vmatpush2.msra.mxu0 %v68
    %202 = vmatprep.subr.mxu0 0.0
    %203 = vmatpush2.msra.mxu0 %v67
    %204 = vmatprep.subr.mxu0 0.0
    %205 = vmatpush2.msra.mxu0 %v66
    %206 = vmatprep.subr.mxu0 0.0
    %207 = vmatpush2.msra.mxu0 %v65
    %208 = vmatprep.subr.mxu0 0.0
    %209 = vmatpush2.msra.mxu0 %v64
    %210 = vmatprep.subr.mxu0 0.0
    %211 = vmatpush2.msra.mxu0 %v63
    %212 = vmatprep.subr.mxu0 0.0
    %213 = vmatpush2.msra.mxu0 %v62
    %214 = vmatprep.subr.mxu0 0.0
    %215 = vmatpush2.msra.mxu0 %v61
    %216 = vmatprep.subr.mxu0 0.0
    %217 = vmatpush2.msra.mxu0 %v60
    %218 = vmatprep.subr.mxu0 0.0
    %219 = vmatpush2.msra.mxu0 %v59
    %220 = vmatprep.subr.mxu0 0.0
    %221 = vmatpush2.msra.mxu0 %v58
    %222 = vmatprep.subr.mxu0 0.0
    %223 = vmatpush2.msra.mxu0 %v57
    %224 = vmatprep.subr.mxu0 0.0
    %225 = vmatpush2.msra.mxu0 %v56
    %226 = vmatprep.subr.mxu0 0.0
    %227 = vmatpush2.msra.mxu0 %v55
    %228 = vmatprep.subr.mxu0 0.0
    %229 = vmatpush2.msra.mxu0 %v54
    %230 = vmatprep.mubr.f32.mxu0 %v23
    %231 = vmatmul.mubr.f32.gmra.mxu0 %v22
    %v232 = vpop.f32.mrf.mxu0
    %v233 = vadd.f32 0.0, %v232
    %v234 = vpop.f32.mrf.mxu0
    %235 = vmatprep.mubr.f32.mxu0 %v31
    %236 = vmatmul.mubr.f32.gmra.mxu0 %v30
    %v237 = vpop.f32.mrf.mxu0
    %v238 = vadd.f32 0.0, %v237
    %v239 = vpop.f32.mrf.mxu0
    %240 = vdwg.mxu0
    %241 = vmatprep.subr.mxu0 0.0
    %242 = vmatpush1.msra.mxu0 %v85
    %243 = vmatprep.subr.mxu0 0.0
    %244 = vmatpush1.msra.mxu0 %v84
    %245 = vmatprep.subr.mxu0 0.0
    %246 = vmatpush1.msra.mxu0 %v83
    %247 = vmatprep.subr.mxu0 0.0
    %248 = vmatpush1.msra.mxu0 %v82
    %249 = vmatprep.subr.mxu0 0.0
    %250 = vmatpush1.msra.mxu0 %v81
    %251 = vmatprep.subr.mxu0 0.0
    %252 = vmatpush1.msra.mxu0 %v80
    %253 = vmatprep.subr.mxu0 0.0
    %254 = vmatpush1.msra.mxu0 %v79
    %255 = vmatprep.subr.mxu0 0.0
    %256 = vmatpush1.msra.mxu0 %v78
    %257 = vmatprep.subr.mxu0 0.0
    %258 = vmatpush1.msra.mxu0 %v77
    %259 = vmatprep.subr.mxu0 0.0
    %260 = vmatpush1.msra.mxu0 %v76
    %261 = vmatprep.subr.mxu0 0.0
    %262 = vmatpush1.msra.mxu0 %v75
    %263 = vmatprep.subr.mxu0 0.0
    %264 = vmatpush1.msra.mxu0 %v74
    %265 = vmatprep.subr.mxu0 0.0
    %266 = vmatpush1.msra.mxu0 %v73
    %267 = vmatprep.subr.mxu0 0.0
    %268 = vmatpush1.msra.mxu0 %v72
    %269 = vmatprep.subr.mxu0 0.0
    %270 = vmatpush1.msra.mxu0 %v71
    %271 = vmatprep.subr.mxu0 0.0
    %272 = vmatpush1.msra.mxu0 %v70
    %273 = vmatprep.subr.mxu0 0.0
    %274 = vmatpush2.msra.mxu0 %v101
    %275 = vmatprep.subr.mxu0 0.0
    %276 = vmatpush2.msra.mxu0 %v100
    %277 = vmatprep.subr.mxu0 0.0
    %278 = vmatpush2.msra.mxu0 %v99
    %279 = vmatprep.subr.mxu0 0.0
    %280 = vmatpush2.msra.mxu0 %v98
    %281 = vmatprep.subr.mxu0 0.0
    %282 = vmatpush2.msra.mxu0 %v97
    %283 = vmatprep.subr.mxu0 0.0
    %284 = vmatpush2.msra.mxu0 %v96
    %285 = vmatprep.subr.mxu0 0.0
    %286 = vmatpush2.msra.mxu0 %v95
    %287 = vmatprep.subr.mxu0 0.0
    %288 = vmatpush2.msra.mxu0 %v94
    %289 = vmatprep.subr.mxu0 0.0
    %290 = vmatpush2.msra.mxu0 %v93
    %291 = vmatprep.subr.mxu0 0.0
    %292 = vmatpush2.msra.mxu0 %v92
    %293 = vmatprep.subr.mxu0 0.0
    %294 = vmatpush2.msra.mxu0 %v91
    %295 = vmatprep.subr.mxu0 0.0
    %296 = vmatpush2.msra.mxu0 %v90
    %297 = vmatprep.subr.mxu0 0.0
    %298 = vmatpush2.msra.mxu0 %v89
    %299 = vmatprep.subr.mxu0 0.0
    %300 = vmatpush2.msra.mxu0 %v88
    %301 = vmatprep.subr.mxu0 0.0
    %302 = vmatpush2.msra.mxu0 %v87
    %303 = vmatprep.subr.mxu0 0.0
    %304 = vmatpush2.msra.mxu0 %v86
    %305 = vmatprep.mubr.f32.mxu0 %v25
    %306 = vmatmul.mubr.f32.gmra.mxu0 %v24
    %v307 = vpop.f32.mrf.mxu0
    %v308 = vadd.f32 %v233, %v307
    %v309 = vpop.f32.mrf.mxu0
    %310 = vmatprep.mubr.f32.mxu0 %v33
    %311 = vmatmul.mubr.f32.gmra.mxu0 %v32
    %v312 = vpop.f32.mrf.mxu0
    %v313 = vadd.f32 %v238, %v312
    %v314 = vpop.f32.mrf.mxu0
    %315 = vdwg.mxu0
    %316 = vmatprep.subr.mxu0 0.0
    %317 = vmatpush1.msra.mxu0 %v117
    %318 = vmatprep.subr.mxu0 0.0
    %319 = vmatpush1.msra.mxu0 %v116
    %320 = vmatprep.subr.mxu0 0.0
    %321 = vmatpush1.msra.mxu0 %v115
    %322 = vmatprep.subr.mxu0 0.0
    %323 = vmatpush1.msra.mxu0 %v114
    %324 = vmatprep.subr.mxu0 0.0
    %325 = vmatpush1.msra.mxu0 %v113
    %326 = vmatprep.subr.mxu0 0.0
    %327 = vmatpush1.msra.mxu0 %v112
    %328 = vmatprep.subr.mxu0 0.0
    %329 = vmatpush1.msra.mxu0 %v111
    %330 = vmatprep.subr.mxu0 0.0
    %331 = vmatpush1.msra.mxu0 %v110
    %332 = vmatprep.subr.mxu0 0.0
    %333 = vmatpush1.msra.mxu0 %v109
    %334 = vmatprep.subr.mxu0 0.0
    %335 = vmatpush1.msra.mxu0 %v108
    %336 = vmatprep.subr.mxu0 0.0
    %337 = vmatpush1.msra.mxu0 %v107
    %338 = vmatprep.subr.mxu0 0.0
    %339 = vmatpush1.msra.mxu0 %v106
    %340 = vmatprep.subr.mxu0 0.0
    %341 = vmatpush1.msra.mxu0 %v105
    %342 = vmatprep.subr.mxu0 0.0
    %343 = vmatpush1.msra.mxu0 %v104
    %344 = vmatprep.subr.mxu0 0.0
    %345 = vmatpush1.msra.mxu0 %v103
    %346 = vmatprep.subr.mxu0 0.0
    %347 = vmatpush1.msra.mxu0 %v102
    %348 = vmatprep.subr.mxu0 0.0
    %349 = vmatpush2.msra.mxu0 %v133
    %350 = vmatprep.subr.mxu0 0.0
    %351 = vmatpush2.msra.mxu0 %v132
    %352 = vmatprep.subr.mxu0 0.0
    %353 = vmatpush2.msra.mxu0 %v131
    %354 = vmatprep.subr.mxu0 0.0
    %355 = vmatpush2.msra.mxu0 %v130
    %356 = vmatprep.subr.mxu0 0.0
    %357 = vmatpush2.msra.mxu0 %v129
    %358 = vmatprep.subr.mxu0 0.0
    %359 = vmatpush2.msra.mxu0 %v128
    %360 = vmatprep.subr.mxu0 0.0
    %361 = vmatpush2.msra.mxu0 %v127
    %362 = vmatprep.subr.mxu0 0.0
    %363 = vmatpush2.msra.mxu0 %v126
    %364 = vmatprep.subr.mxu0 0.0
    %365 = vmatpush2.msra.mxu0 %v125
    %366 = vmatprep.subr.mxu0 0.0
    %367 = vmatpush2.msra.mxu0 %v124
    %368 = vmatprep.subr.mxu0 0.0
    %369 = vmatpush2.msra.mxu0 %v123
    %370 = vmatprep.subr.mxu0 0.0
    %371 = vmatpush2.msra.mxu0 %v122
    %372 = vmatprep.subr.mxu0 0.0
    %373 = vmatpush2.msra.mxu0 %v121
    %374 = vmatprep.subr.mxu0 0.0
    %375 = vmatpush2.msra.mxu0 %v120
    %376 = vmatprep.subr.mxu0 0.0
    %377 = vmatpush2.msra.mxu0 %v119
    %378 = vmatprep.subr.mxu0 0.0
    %379 = vmatpush2.msra.mxu0 %v118
    %380 = vmatprep.mubr.f32.mxu0 %v27
    %381 = vmatmul.mubr.f32.gmra.mxu0 %v26
    %v382 = vpop.f32.mrf.mxu0
    %v383 = vadd.f32 %v308, %v382
    %v384 = vpop.f32.mrf.mxu0
    %385 = vmatprep.mubr.f32.mxu0 %v35
    %386 = vmatmul.mubr.f32.gmra.mxu0 %v34
    %v387 = vpop.f32.mrf.mxu0
    %v388 = vadd.f32 %v313, %v387
    %v389 = vpop.f32.mrf.mxu0
    %390 = vdwg.mxu0
    %391 = vmatprep.subr.mxu0 0.0
    %392 = vmatpush1.msra.mxu0 %v149
    %393 = vmatprep.subr.mxu0 0.0
    %394 = vmatpush1.msra.mxu0 %v148
    %395 = vmatprep.subr.mxu0 0.0
    %396 = vmatpush1.msra.mxu0 %v147
    %397 = vmatprep.subr.mxu0 0.0
    %398 = vmatpush1.msra.mxu0 %v146
    %399 = vmatprep.subr.mxu0 0.0
    %400 = vmatpush1.msra.mxu0 %v145
    %401 = vmatprep.subr.mxu0 0.0
    %402 = vmatpush1.msra.mxu0 %v144
    %403 = vmatprep.subr.mxu0 0.0
    %404 = vmatpush1.msra.mxu0 %v143
    %405 = vmatprep.subr.mxu0 0.0
    %406 = vmatpush1.msra.mxu0 %v142
    %407 = vmatprep.subr.mxu0 0.0
    %408 = vmatpush1.msra.mxu0 %v141
    %409 = vmatprep.subr.mxu0 0.0
    %410 = vmatpush1.msra.mxu0 %v140
    %411 = vmatprep.subr.mxu0 0.0
    %412 = vmatpush1.msra.mxu0 %v139
    %413 = vmatprep.subr.mxu0 0.0
    %414 = vmatpush1.msra.mxu0 %v138
    %415 = vmatprep.subr.mxu0 0.0
    %416 = vmatpush1.msra.mxu0 %v137
    %417 = vmatprep.subr.mxu0 0.0
    %418 = vmatpush1.msra.mxu0 %v136
    %419 = vmatprep.subr.mxu0 0.0
    %420 = vmatpush1.msra.mxu0 %v135
    %421 = vmatprep.subr.mxu0 0.0
    %422 = vmatpush1.msra.mxu0 %v134
    %423 = vmatprep.subr.mxu0 0.0
    %424 = vmatpush2.msra.mxu0 %v165
    %425 = vmatprep.subr.mxu0 0.0
    %426 = vmatpush2.msra.mxu0 %v164
    %427 = vmatprep.subr.mxu0 0.0
    %428 = vmatpush2.msra.mxu0 %v163
    %429 = vmatprep.subr.mxu0 0.0
    %430 = vmatpush2.msra.mxu0 %v162
    %431 = vmatprep.subr.mxu0 0.0
    %432 = vmatpush2.msra.mxu0 %v161
    %433 = vmatprep.subr.mxu0 0.0
    %434 = vmatpush2.msra.mxu0 %v160
    %435 = vmatprep.subr.mxu0 0.0
    %436 = vmatpush2.msra.mxu0 %v159
    %437 = vmatprep.subr.mxu0 0.0
    %438 = vmatpush2.msra.mxu0 %v158
    %439 = vmatprep.subr.mxu0 0.0
    %440 = vmatpush2.msra.mxu0 %v157
    %441 = vmatprep.subr.mxu0 0.0
    %442 = vmatpush2.msra.mxu0 %v156
    %443 = vmatprep.subr.mxu0 0.0
    %444 = vmatpush2.msra.mxu0 %v155
    %445 = vmatprep.subr.mxu0 0.0
    %446 = vmatpush2.msra.mxu0 %v154
    %447 = vmatprep.subr.mxu0 0.0
    %448 = vmatpush2.msra.mxu0 %v153
    %449 = vmatprep.subr.mxu0 0.0
    %450 = vmatpush2.msra.mxu0 %v152
    %451 = vmatprep.subr.mxu0 0.0
    %452 = vmatpush2.msra.mxu0 %v151
    %453 = vmatprep.subr.mxu0 0.0
    %454 = vmatpush2.msra.mxu0 %v150
    %455 = vmatprep.mubr.f32.mxu0 %v29
    %456 = vmatmul.mubr.f32.gmra.mxu0 %v28
    %v457 = vpop.f32.mrf.mxu0
    %v458 = vadd.f32 %v383, %v457
    %v459 = vpop.f32.mrf.mxu0
    %460 = vmatprep.mubr.f32.mxu0 %v37
    %461 = vmatmul.mubr.f32.gmra.mxu0 %v36
    %v462 = vpop.f32.mrf.mxu0
    %v463 = vadd.f32 %v388, %v462
    %v464 = vpop.f32.mrf.mxu0
    %465 = vdwg.mxu0
    %s466 = smul.u32 0, 16
    %s467 = scalar_lea.vmem [#allocation2], %s466
    %vm468 = vcmask 130048
    %469 = vst.msk [vmem:[%s467] sm:$0xff] %vm468, %v458
    %470 = vst.msk [vmem:[%s467 + $0x8] sm:$0xff] %vm468, %v463
    %s471 = sld [smem:[#allocation3]]
    %v472 = vld [vmem:[%s2] sm:$0xff]
    %v473 = vld [vmem:[%s2 + $0x8] sm:$0xff]
    %v474 = vld [vmem:[%s3] sm:$0x1]
    %v475 = vld [vmem:[#allocation2] sm:$0xff]
    %v476 = vld [vmem:[#allocation2 + $0x8] sm:$0xff]
    %v477 = vmax.f32 %v475, 0.0
    %v478 = vmax.f32 %v476, 0.0
    %v479 = vadd.f32 %v477, 1e-08
    %v480 = vadd.f32 %v478, 1e-08
    %v481 = vtanh.pop %v479
    %v482 = vtanh.pop %v480
    %v483 = vlog2.pop %v481
    %v484 = vmul.f32 %v483, 0.6931472
    %v485 = vlog2.pop %v482
    %v486 = vmul.f32 %v485, 0.6931472
    %v488 = vsel %vm468, %v484, 0
    %v491 = vsel %vm468, %v486, 0
    %493 = vmatprep.subr.mxu0 0.0
    %494 = vmatpush1.msra.mxu0 0.0
    %495 = vmatprep.subr.mxu0 0.0
    %496 = vmatpush1.msra.mxu0 0.0
    %497 = vmatprep.subr.mxu0 0.0
    %498 = vmatpush1.msra.mxu0 0.0
    %499 = vmatprep.subr.mxu0 0.0
    %500 = vmatpush1.msra.mxu0 0.0
    %501 = vmatprep.subr.mxu0 0.0
    %502 = vmatpush1.msra.mxu0 0.0
    %503 = vmatprep.subr.mxu0 0.0
    %504 = vmatpush1.msra.mxu0 0.0
    %505 = vmatprep.subr.mxu0 0.0
    %506 = vmatpush1.msra.mxu0 0.0
    %507 = vmatprep.subr.mxu0 0.0
    %508 = vmatpush1.msra.mxu0 0.0
    %509 = vmatprep.subr.mxu0 0.0
    %510 = vmatpush1.msra.mxu0 0.0
    %511 = vmatprep.subr.mxu0 0.0
    %512 = vmatpush1.msra.mxu0 0.0
    %513 = vmatprep.subr.mxu0 0.0
    %514 = vmatpush1.msra.mxu0 0.0
    %515 = vmatprep.subr.mxu0 0.0
    %516 = vmatpush1.msra.mxu0 0.0
    %517 = vmatprep.subr.mxu0 0.0
    %518 = vmatpush1.msra.mxu0 0.0
    %519 = vmatprep.subr.mxu0 0.0
    %520 = vmatpush1.msra.mxu0 0.0
    %521 = vmatprep.subr.mxu0 0.0
    %522 = vmatpush1.msra.mxu0 %v473
    %523 = vmatprep.subr.mxu0 0.0
    %524 = vmatpush1.msra.mxu0 %v472
    %525 = vmatprep.subr.mxu0 0.0
    %526 = vmatpush2.msra.mxu0 0.0
    %527 = vmatprep.subr.mxu0 0.0
    %528 = vmatpush2.msra.mxu0 0.0
    %529 = vmatprep.subr.mxu0 0.0
    %530 = vmatpush2.msra.mxu0 0.0
    %531 = vmatprep.subr.mxu0 0.0
    %532 = vmatpush2.msra.mxu0 0.0
    %533 = vmatprep.subr.mxu0 0.0
    %534 = vmatpush2.msra.mxu0 0.0
    %535 = vmatprep.subr.mxu0 0.0
    %536 = vmatpush2.msra.mxu0 0.0
    %537 = vmatprep.subr.mxu0 0.0
    %538 = vmatpush2.msra.mxu0 0.0
    %539 = vmatprep.subr.mxu0 0.0
    %540 = vmatpush2.msra.mxu0 0.0
    %541 = vmatprep.subr.mxu0 0.0
    %542 = vmatpush2.msra.mxu0 0.0
    %543 = vmatprep.subr.mxu0 0.0
    %544 = vmatpush2.msra.mxu0 0.0
    %545 = vmatprep.subr.mxu0 0.0
    %546 = vmatpush2.msra.mxu0 0.0
    %547 = vmatprep.subr.mxu0 0.0
    %548 = vmatpush2.msra.mxu0 0.0
    %549 = vmatprep.subr.mxu0 0.0
    %550 = vmatpush2.msra.mxu0 0.0
    %551 = vmatprep.subr.mxu0 0.0
    %552 = vmatpush2.msra.mxu0 0.0
    %553 = vmatprep.subr.mxu0 0.0
    %554 = vmatpush2.msra.mxu0 0.0
    %555 = vmatprep.subr.mxu0 0.0
    %556 = vmatpush2.msra.mxu0 0.0
    %557 = vmatprep.mubr.f32.mxu0 0.0
    %558 = vmatmul.mubr.f32.gmra.mxu0 %v488
    %v559 = vpop.f32.mrf.mxu0
    %v560 = vadd.f32 0.0, %v559
    %v561 = vpop.f32.mrf.mxu0
    %562 = vmatprep.mubr.f32.mxu0 0.0
    %563 = vmatmul.mubr.f32.gmra.mxu0 %v491
    %v564 = vpop.f32.mrf.mxu0
    %v565 = vadd.f32 0.0, %v564
    %v566 = vpop.f32.mrf.mxu0
    %567 = vdwg.mxu0
    %v568 = vmul.f32 %v560, 1.442695
    %v569 = vpow.pop %v568
    %v570 = vmul.f32 %v565, 1.442695
    %v571 = vpow.pop %v570
    %v572 = vsub.f32 %v569, 1e-08
    %v573 = vsub.f32 %v571, 1e-08
    %v575 = vlaneseq
    %v576 = vshrl.u32 %v575, 7
    %v577 = vsub.s32 0, %v576
    %v578 = vrot.slane %v474, %v577
    %v580 = vmul.f32 %v572, %v578
    %v581 = vmul.f32 %v573, %v578
    %vm582 = vcmask 261120
    %v583 = vsel %vm582, %v580, 0.0
    %584 = vadd.xlane.f32.xlu0 %v583
    %v585 = vpop.xlane.xlu0 %584
    %v586 = vsel %vm582, %v581, 0.0
    %587 = vadd.xlane.f32.xlu0 %v586
    %v588 = vpop.xlane.xlu0 %587
    %v589 = vlaneseq
    %v590 = vand.u32 %v589, 127
    %v591 = vmul.u32 %v590, 2
    %vm592 = vcmp.lt.f32.partialorder %v580, 0.0
    %vm593 = vcmp.lt.f32.partialorder %v581, 0.0
    %v594 = vsel %vm592, 1, 0
    %v595 = vsel %vm593, 1, 0
    %v596 = vadd.s32 %v591, %v594
    %v597 = vadd.s32 %v591, %v595
    %v598 = vand.u32 2147483647, %v580
    %v599 = vand.u32 2147483647, %v581
    %v600 = vsel %vm582, %v598, -inf
    %601 = vmax.xlane.f32.xlu0 %v600
    %v602 = vpop.xlane.xlu0 %601
    %v603 = vsel %vm582, %v599, -inf
    %604 = vmax.xlane.f32.xlu0 %v603
    %v605 = vpop.xlane.xlu0 %604
    %vm606 = vcmp.eq.f32.partialorder %v598, %v602
    %vm607 = vcmp.eq.f32.partialorder %v599, %v605
    %v608 = vsel %vm606, %v596, 64
    %v609 = vsel %vm607, %v597, 64
    %v610 = vsel %vm582, %v608, 2147483647
    %v611 = vand.u32 %v610, 65535
    %v612 = vshra.s32 %v610, 16
    %v613 = vcvt.s32.f32 %v611
    %v614 = vcvt.s32.f32 %v612
    %615 = vmin.xlane.f32.xlu0 %v614
    %v616 = vpop.xlane.xlu0 %615
    %vm617 = vcmp.eq.f32.partialorder %v614, %v616
    %v618 = vsel %vm617, %v613, inf
    %619 = vmin.xlane.f32.xlu0 %v618
    %v620 = vpop.xlane.xlu0 %619
    %v621 = vcvt.f32.s32 %v620
    %v622 = vcvt.f32.s32 %v616
    %v623 = vshll.u32 %v622, 16
    %v624 = vadd.s32 %v623, %v621
    %v625 = vsel %vm582, %v609, 2147483647
    %v626 = vand.u32 %v625, 65535
    %v627 = vshra.s32 %v625, 16
    %v628 = vcvt.s32.f32 %v626
    %v629 = vcvt.s32.f32 %v627
    %630 = vmin.xlane.f32.xlu0 %v629
    %v631 = vpop.xlane.xlu0 %630
    %vm632 = vcmp.eq.f32.partialorder %v629, %v631
    %v633 = vsel %vm632, %v628, inf
    %634 = vmin.xlane.f32.xlu0 %v633
    %v635 = vpop.xlane.xlu0 %634
    %v636 = vcvt.f32.s32 %v635
    %v637 = vcvt.f32.s32 %v631
    %v638 = vshll.u32 %v637, 16
    %v639 = vadd.s32 %v638, %v636
    %v640 = vand.u32 %v624, 1
    %v641 = vand.u32 %v639, 1
    %v642 = vcvt.s32.f32 %v640
    %v643 = vcvt.s32.f32 %v641
    %v644 = vmul.f32 %v642, 2.0
    %v645 = vmul.f32 %v643, 2.0
    %v646 = vsub.f32 1.0, %v644
    %v647 = vsub.f32 1.0, %v645
    %v648 = vmul.f32 %v602, %v646
    %v649 = vmul.f32 %v605, %v647
    %v650 = vadd.f32 %v648, 0.0
    %v651 = vadd.f32 %v649, 0.0
    %v652 = vshra.s32 %v624, 1
    %v653 = vshra.s32 %v639, 1
    %vm654 = vcmp.eq.s32.totalorder %v590, %v652
    %vm655 = vcmp.eq.s32.totalorder %v590, %v653
    %v656 = vsel %vm654, -1.0, %v598
    %v657 = vsel %vm655, -1.0, %v599
    %v658 = vsel %vm582, %v656, -inf
    %659 = vmax.xlane.f32.xlu0 %v658
    %v660 = vpop.xlane.xlu0 %659
    %v661 = vsel %vm582, %v657, -inf
    %662 = vmax.xlane.f32.xlu0 %v661
    %v663 = vpop.xlane.xlu0 %662
    %vm664 = vcmp.eq.f32.partialorder %v656, %v660
    %vm665 = vcmp.eq.f32.partialorder %v657, %v663
    %v666 = vsel %vm664, %v596, 64
    %v667 = vsel %vm665, %v597, 64
    %v668 = vsel %vm582, %v666, 2147483647
    %v669 = vand.u32 %v668, 65535
    %v670 = vshra.s32 %v668, 16
    %v671 = vcvt.s32.f32 %v669
    %v672 = vcvt.s32.f32 %v670
    %673 = vmin.xlane.f32.xlu0 %v672
    %v674 = vpop.xlane.xlu0 %673
    %vm675 = vcmp.eq.f32.partialorder %v672, %v674
    %v676 = vsel %vm675, %v671, inf
    %677 = vmin.xlane.f32.xlu0 %v676
    %v678 = vpop.xlane.xlu0 %677
    %v679 = vcvt.f32.s32 %v678
    %v680 = vcvt.f32.s32 %v674
    %v681 = vshll.u32 %v680, 16
    %v682 = vadd.s32 %v681, %v679
    %v683 = vsel %vm582, %v667, 2147483647
    %v684 = vand.u32 %v683, 65535
    %v685 = vshra.s32 %v683, 16
    %v686 = vcvt.s32.f32 %v684
    %v687 = vcvt.s32.f32 %v685
    %688 = vmin.xlane.f32.xlu0 %v687
    %v689 = vpop.xlane.xlu0 %688
    %vm690 = vcmp.eq.f32.partialorder %v687, %v689
    %v691 = vsel %vm690, %v686, inf
    %692 = vmin.xlane.f32.xlu0 %v691
    %v693 = vpop.xlane.xlu0 %692
    %v694 = vcvt.f32.s32 %v693
    %v695 = vcvt.f32.s32 %v689
    %v696 = vshll.u32 %v695, 16
    %v697 = vadd.s32 %v696, %v694
    %v698 = vand.u32 %v682, 1
    %v699 = vand.u32 %v697, 1
    %v700 = vcvt.s32.f32 %v698
    %v701 = vcvt.s32.f32 %v699
    %v702 = vmul.f32 %v700, 2.0
    %v703 = vmul.f32 %v701, 2.0
    %v704 = vsub.f32 1.0, %v702
    %v705 = vsub.f32 1.0, %v703
    %v706 = vmul.f32 %v660, %v704
    %v707 = vmul.f32 %v663, %v705
    %v708 = vadd.f32 %v650, %v706
    %v709 = vadd.f32 %v651, %v707
    %v710 = vshra.s32 %v682, 1
    %v711 = vshra.s32 %v697, 1
    %vm712 = vcmp.eq.s32.totalorder %v590, %v710
    %vm713 = vcmp.eq.s32.totalorder %v590, %v711
    %v714 = vsel %vm712, -1.0, %v656
    %v715 = vsel %vm713, -1.0, %v657
    %v716 = vsel %vm582, %v714, -inf
    %717 = vmax.xlane.f32.xlu0 %v716
    %v718 = vpop.xlane.xlu0 %717
    %v719 = vsel %vm582, %v715, -inf
    %720 = vmax.xlane.f32.xlu0 %v719
    %v721 = vpop.xlane.xlu0 %720
    %vm722 = vcmp.eq.f32.partialorder %v714, %v718
    %vm723 = vcmp.eq.f32.partialorder %v715, %v721
    %v724 = vsel %vm722, %v596, 64
    %v725 = vsel %vm723, %v597, 64
    %v726 = vsel %vm582, %v724, 2147483647
    %v727 = vand.u32 %v726, 65535
    %v728 = vshra.s32 %v726, 16
    %v729 = vcvt.s32.f32 %v727
    %v730 = vcvt.s32.f32 %v728
    %731 = vmin.xlane.f32.xlu0 %v730
    %v732 = vpop.xlane.xlu0 %731
    %vm733 = vcmp.eq.f32.partialorder %v730, %v732
    %v734 = vsel %vm733, %v729, inf
    %735 = vmin.xlane.f32.xlu0 %v734
    %v736 = vpop.xlane.xlu0 %735
    %v737 = vcvt.f32.s32 %v736
    %v738 = vcvt.f32.s32 %v732
    %v739 = vshll.u32 %v738, 16
    %v740 = vadd.s32 %v739, %v737
    %v741 = vsel %vm582, %v725, 2147483647
    %v742 = vand.u32 %v741, 65535
    %v743 = vshra.s32 %v741, 16
    %v744 = vcvt.s32.f32 %v742
    %v745 = vcvt.s32.f32 %v743
    %746 = vmin.xlane.f32.xlu0 %v745
    %v747 = vpop.xlane.xlu0 %746
    %vm748 = vcmp.eq.f32.partialorder %v745, %v747
    %v749 = vsel %vm748, %v744, inf
    %750 = vmin.xlane.f32.xlu0 %v749
    %v751 = vpop.xlane.xlu0 %750
    %v752 = vcvt.f32.s32 %v751
    %v753 = vcvt.f32.s32 %v747
    %v754 = vshll.u32 %v753, 16
    %v755 = vadd.s32 %v754, %v752
    %v756 = vand.u32 %v740, 1
    %v757 = vand.u32 %v755, 1
    %v758 = vcvt.s32.f32 %v756
    %v759 = vcvt.s32.f32 %v757
    %v760 = vmul.f32 %v758, 2.0
    %v761 = vmul.f32 %v759, 2.0
    %v762 = vsub.f32 1.0, %v760
    %v763 = vsub.f32 1.0, %v761
    %v764 = vmul.f32 %v718, %v762
    %v765 = vmul.f32 %v721, %v763
    %v766 = vadd.f32 %v708, %v764
    %v767 = vadd.f32 %v709, %v765
    %v768 = vshra.s32 %v740, 1
    %v769 = vshra.s32 %v755, 1
    %vm770 = vcmp.eq.s32.totalorder %v590, %v768
    %vm771 = vcmp.eq.s32.totalorder %v590, %v769
    %v772 = vsel %vm770, -1.0, %v714
    %v773 = vsel %vm771, -1.0, %v715
    %v774 = vsel %vm582, %v772, -inf
    %775 = vmax.xlane.f32.xlu0 %v774
    %v776 = vpop.xlane.xlu0 %775
    %v777 = vsel %vm582, %v773, -inf
    %778 = vmax.xlane.f32.xlu0 %v777
    %v779 = vpop.xlane.xlu0 %778
    %vm780 = vcmp.eq.f32.partialorder %v772, %v776
    %vm781 = vcmp.eq.f32.partialorder %v773, %v779
    %v782 = vsel %vm780, %v596, 64
    %v783 = vsel %vm781, %v597, 64
    %v784 = vsel %vm582, %v782, 2147483647
    %v785 = vand.u32 %v784, 65535
    %v786 = vshra.s32 %v784, 16
    %v787 = vcvt.s32.f32 %v785
    %v788 = vcvt.s32.f32 %v786
    %789 = vmin.xlane.f32.xlu0 %v788
    %v790 = vpop.xlane.xlu0 %789
    %vm791 = vcmp.eq.f32.partialorder %v788, %v790
    %v792 = vsel %vm791, %v787, inf
    %793 = vmin.xlane.f32.xlu0 %v792
    %v794 = vpop.xlane.xlu0 %793
    %v795 = vcvt.f32.s32 %v794
    %v796 = vcvt.f32.s32 %v790
    %v797 = vshll.u32 %v796, 16
    %v798 = vadd.s32 %v797, %v795
    %v799 = vsel %vm582, %v783, 2147483647
    %v800 = vand.u32 %v799, 65535
    %v801 = vshra.s32 %v799, 16
    %v802 = vcvt.s32.f32 %v800
    %v803 = vcvt.s32.f32 %v801
    %804 = vmin.xlane.f32.xlu0 %v803
    %v805 = vpop.xlane.xlu0 %804
    %vm806 = vcmp.eq.f32.partialorder %v803, %v805
    %v807 = vsel %vm806, %v802, inf
    %808 = vmin.xlane.f32.xlu0 %v807
    %v809 = vpop.xlane.xlu0 %808
    %v810 = vcvt.f32.s32 %v809
    %v811 = vcvt.f32.s32 %v805
    %v812 = vshll.u32 %v811, 16
    %v813 = vadd.s32 %v812, %v810
    %v814 = vand.u32 %v798, 1
    %v815 = vand.u32 %v813, 1
    %v816 = vcvt.s32.f32 %v814
    %v817 = vcvt.s32.f32 %v815
    %v818 = vmul.f32 %v816, 2.0
    %v819 = vmul.f32 %v817, 2.0
    %v820 = vsub.f32 1.0, %v818
    %v821 = vsub.f32 1.0, %v819
    %v822 = vmul.f32 %v776, %v820
    %v823 = vmul.f32 %v779, %v821
    %v824 = vadd.f32 %v766, %v822
    %v825 = vadd.f32 %v767, %v823
    %v826 = vshra.s32 %v798, 1
    %v827 = vshra.s32 %v813, 1
    %vm828 = vcmp.eq.s32.totalorder %v590, %v826
    %vm829 = vcmp.eq.s32.totalorder %v590, %v827
    %v830 = vsel %vm828, -1.0, %v772
    %v831 = vsel %vm829, -1.0, %v773
    %v832 = vsel %vm582, %v830, -inf
    %833 = vmax.xlane.f32.xlu0 %v832
    %v834 = vpop.xlane.xlu0 %833
    %v835 = vsel %vm582, %v831, -inf
    %836 = vmax.xlane.f32.xlu0 %v835
    %v837 = vpop.xlane.xlu0 %836
    %vm838 = vcmp.eq.f32.partialorder %v830, %v834
    %vm839 = vcmp.eq.f32.partialorder %v831, %v837
    %v840 = vsel %vm838, %v596, 64
    %v841 = vsel %vm839, %v597, 64
    %v842 = vsel %vm582, %v840, 2147483647
    %v843 = vand.u32 %v842, 65535
    %v844 = vshra.s32 %v842, 16
    %v845 = vcvt.s32.f32 %v843
    %v846 = vcvt.s32.f32 %v844
    %847 = vmin.xlane.f32.xlu0 %v846
    %v848 = vpop.xlane.xlu0 %847
    %vm849 = vcmp.eq.f32.partialorder %v846, %v848
    %v850 = vsel %vm849, %v845, inf
    %851 = vmin.xlane.f32.xlu0 %v850
    %v852 = vpop.xlane.xlu0 %851
    %v853 = vcvt.f32.s32 %v852
    %v854 = vcvt.f32.s32 %v848
    %v855 = vshll.u32 %v854, 16
    %v856 = vadd.s32 %v855, %v853
    %v857 = vsel %vm582, %v841, 2147483647
    %v858 = vand.u32 %v857, 65535
    %v859 = vshra.s32 %v857, 16
    %v860 = vcvt.s32.f32 %v858
    %v861 = vcvt.s32.f32 %v859
    %862 = vmin.xlane.f32.xlu0 %v861
    %v863 = vpop.xlane.xlu0 %862
    %vm864 = vcmp.eq.f32.partialorder %v861, %v863
    %v865 = vsel %vm864, %v860, inf
    %866 = vmin.xlane.f32.xlu0 %v865
    %v867 = vpop.xlane.xlu0 %866
    %v868 = vcvt.f32.s32 %v867
    %v869 = vcvt.f32.s32 %v863
    %v870 = vshll.u32 %v869, 16
    %v871 = vadd.s32 %v870, %v868
    %v872 = vand.u32 %v856, 1
    %v873 = vand.u32 %v871, 1
    %v874 = vcvt.s32.f32 %v872
    %v875 = vcvt.s32.f32 %v873
    %v876 = vmul.f32 %v874, 2.0
    %v877 = vmul.f32 %v875, 2.0
    %v878 = vsub.f32 1.0, %v876
    %v879 = vsub.f32 1.0, %v877
    %v880 = vmul.f32 %v834, %v878
    %v881 = vmul.f32 %v837, %v879
    %v882 = vadd.f32 %v824, %v880
    %v883 = vadd.f32 %v825, %v881
    %v884 = vshra.s32 %v856, 1
    %v885 = vshra.s32 %v871, 1
    %vm886 = vcmp.eq.s32.totalorder %v590, %v884
    %vm887 = vcmp.eq.s32.totalorder %v590, %v885
    %v888 = vsel %vm886, -1.0, %v830
    %v889 = vsel %vm887, -1.0, %v831
    %v890 = vsel %vm582, %v888, -inf
    %891 = vmax.xlane.f32.xlu0 %v890
    %v892 = vpop.xlane.xlu0 %891
    %v893 = vsel %vm582, %v889, -inf
    %894 = vmax.xlane.f32.xlu0 %v893
    %v895 = vpop.xlane.xlu0 %894
    %vm896 = vcmp.eq.f32.partialorder %v888, %v892
    %vm897 = vcmp.eq.f32.partialorder %v889, %v895
    %v898 = vsel %vm896, %v596, 64
    %v899 = vsel %vm897, %v597, 64
    %v900 = vsel %vm582, %v898, 2147483647
    %v901 = vand.u32 %v900, 65535
    %v902 = vshra.s32 %v900, 16
    %v903 = vcvt.s32.f32 %v901
    %v904 = vcvt.s32.f32 %v902
    %905 = vmin.xlane.f32.xlu0 %v904
    %v906 = vpop.xlane.xlu0 %905
    %vm907 = vcmp.eq.f32.partialorder %v904, %v906
    %v908 = vsel %vm907, %v903, inf
    %909 = vmin.xlane.f32.xlu0 %v908
    %v910 = vpop.xlane.xlu0 %909
    %v911 = vcvt.f32.s32 %v910
    %v912 = vcvt.f32.s32 %v906
    %v913 = vshll.u32 %v912, 16
    %v914 = vadd.s32 %v913, %v911
    %v915 = vsel %vm582, %v899, 2147483647
    %v916 = vand.u32 %v915, 65535
    %v917 = vshra.s32 %v915, 16
    %v918 = vcvt.s32.f32 %v916
    %v919 = vcvt.s32.f32 %v917
    %920 = vmin.xlane.f32.xlu0 %v919
    %v921 = vpop.xlane.xlu0 %920
    %vm922 = vcmp.eq.f32.partialorder %v919, %v921
    %v923 = vsel %vm922, %v918, inf
    %924 = vmin.xlane.f32.xlu0 %v923
    %v925 = vpop.xlane.xlu0 %924
    %v926 = vcvt.f32.s32 %v925
    %v927 = vcvt.f32.s32 %v921
    %v928 = vshll.u32 %v927, 16
    %v929 = vadd.s32 %v928, %v926
    %v930 = vand.u32 %v914, 1
    %v931 = vand.u32 %v929, 1
    %v932 = vcvt.s32.f32 %v930
    %v933 = vcvt.s32.f32 %v931
    %v934 = vmul.f32 %v932, 2.0
    %v935 = vmul.f32 %v933, 2.0
    %v936 = vsub.f32 1.0, %v934
    %v937 = vsub.f32 1.0, %v935
    %v938 = vmul.f32 %v892, %v936
    %v939 = vmul.f32 %v895, %v937
    %v940 = vadd.f32 %v882, %v938
    %v941 = vadd.f32 %v883, %v939
    %v942 = vshra.s32 %v914, 1
    %v943 = vshra.s32 %v929, 1
    %vm944 = vcmp.eq.s32.totalorder %v590, %v942
    %vm945 = vcmp.eq.s32.totalorder %v590, %v943
    %v946 = vsel %vm944, -1.0, %v888
    %v947 = vsel %vm945, -1.0, %v889
    %v948 = vsel %vm582, %v946, -inf
    %949 = vmax.xlane.f32.xlu0 %v948
    %v950 = vpop.xlane.xlu0 %949
    %v951 = vsel %vm582, %v947, -inf
    %952 = vmax.xlane.f32.xlu0 %v951
    %v953 = vpop.xlane.xlu0 %952
    %vm954 = vcmp.eq.f32.partialorder %v946, %v950
    %vm955 = vcmp.eq.f32.partialorder %v947, %v953
    %v956 = vsel %vm954, %v596, 64
    %v957 = vsel %vm955, %v597, 64
    %v958 = vsel %vm582, %v956, 2147483647
    %v959 = vand.u32 %v958, 65535
    %v960 = vshra.s32 %v958, 16
    %v961 = vcvt.s32.f32 %v959
    %v962 = vcvt.s32.f32 %v960
    %963 = vmin.xlane.f32.xlu0 %v962
    %v964 = vpop.xlane.xlu0 %963
    %vm965 = vcmp.eq.f32.partialorder %v962, %v964
    %v966 = vsel %vm965, %v961, inf
    %967 = vmin.xlane.f32.xlu0 %v966
    %v968 = vpop.xlane.xlu0 %967
    %v969 = vcvt.f32.s32 %v968
    %v970 = vcvt.f32.s32 %v964
    %v971 = vshll.u32 %v970, 16
    %v972 = vadd.s32 %v971, %v969
    %v973 = vsel %vm582, %v957, 2147483647
    %v974 = vand.u32 %v973, 65535
    %v975 = vshra.s32 %v973, 16
    %v976 = vcvt.s32.f32 %v974
    %v977 = vcvt.s32.f32 %v975
    %978 = vmin.xlane.f32.xlu0 %v977
    %v979 = vpop.xlane.xlu0 %978
    %vm980 = vcmp.eq.f32.partialorder %v977, %v979
    %v981 = vsel %vm980, %v976, inf
    %982 = vmin.xlane.f32.xlu0 %v981
    %v983 = vpop.xlane.xlu0 %982
    %v984 = vcvt.f32.s32 %v983
    %v985 = vcvt.f32.s32 %v979
    %v986 = vshll.u32 %v985, 16
    %v987 = vadd.s32 %v986, %v984
    %v988 = vand.u32 %v972, 1
    %v989 = vand.u32 %v987, 1
    %v990 = vcvt.s32.f32 %v988
    %v991 = vcvt.s32.f32 %v989
    %v992 = vmul.f32 %v990, 2.0
    %v993 = vmul.f32 %v991, 2.0
    %v994 = vsub.f32 1.0, %v992
    %v995 = vsub.f32 1.0, %v993
    %v996 = vmul.f32 %v950, %v994
    %v997 = vmul.f32 %v953, %v995
    %v998 = vadd.f32 %v940, %v996
    %v999 = vadd.f32 %v941, %v997
    %v1000 = vshra.s32 %v972, 1
    %v1001 = vshra.s32 %v987, 1
    %vm1002 = vcmp.eq.s32.totalorder %v590, %v1000
    %vm1003 = vcmp.eq.s32.totalorder %v590, %v1001
    %v1004 = vsel %vm1002, -1.0, %v946
    %v1005 = vsel %vm1003, -1.0, %v947
    %v1006 = vsel %vm582, %v1004, -inf
    %1007 = vmax.xlane.f32.xlu0 %v1006
    %v1008 = vpop.xlane.xlu0 %1007
    %v1009 = vsel %vm582, %v1005, -inf
    %1010 = vmax.xlane.f32.xlu0 %v1009
    %v1011 = vpop.xlane.xlu0 %1010
    %vm1012 = vcmp.eq.f32.partialorder %v1004, %v1008
    %vm1013 = vcmp.eq.f32.partialorder %v1005, %v1011
    %v1014 = vsel %vm1012, %v596, 64
    %v1015 = vsel %vm1013, %v597, 64
    %v1016 = vsel %vm582, %v1014, 2147483647
    %v1017 = vand.u32 %v1016, 65535
    %v1018 = vshra.s32 %v1016, 16
    %v1019 = vcvt.s32.f32 %v1017
    %v1020 = vcvt.s32.f32 %v1018
    %1021 = vmin.xlane.f32.xlu0 %v1020
    %v1022 = vpop.xlane.xlu0 %1021
    %vm1023 = vcmp.eq.f32.partialorder %v1020, %v1022
    %v1024 = vsel %vm1023, %v1019, inf
    %1025 = vmin.xlane.f32.xlu0 %v1024
    %v1026 = vpop.xlane.xlu0 %1025
    %v1027 = vcvt.f32.s32 %v1026
    %v1028 = vcvt.f32.s32 %v1022
    %v1029 = vshll.u32 %v1028, 16
    %v1030 = vadd.s32 %v1029, %v1027
    %v1031 = vsel %vm582, %v1015, 2147483647
    %v1032 = vand.u32 %v1031, 65535
    %v1033 = vshra.s32 %v1031, 16
    %v1034 = vcvt.s32.f32 %v1032
    %v1035 = vcvt.s32.f32 %v1033
    %1036 = vmin.xlane.f32.xlu0 %v1035
    %v1037 = vpop.xlane.xlu0 %1036
    %vm1038 = vcmp.eq.f32.partialorder %v1035, %v1037
    %v1039 = vsel %vm1038, %v1034, inf
    %1040 = vmin.xlane.f32.xlu0 %v1039
    %v1041 = vpop.xlane.xlu0 %1040
    %v1042 = vcvt.f32.s32 %v1041
    %v1043 = vcvt.f32.s32 %v1037
    %v1044 = vshll.u32 %v1043, 16
    %v1045 = vadd.s32 %v1044, %v1042
    %v1046 = vand.u32 %v1030, 1
    %v1047 = vand.u32 %v1045, 1
    %v1048 = vcvt.s32.f32 %v1046
    %v1049 = vcvt.s32.f32 %v1047
    %v1050 = vmul.f32 %v1048, 2.0
    %v1051 = vmul.f32 %v1049, 2.0
    %v1052 = vsub.f32 1.0, %v1050
    %v1053 = vsub.f32 1.0, %v1051
    %v1054 = vmul.f32 %v1008, %v1052
    %v1055 = vmul.f32 %v1011, %v1053
    %v1056 = vadd.f32 %v998, %v1054
    %v1057 = vadd.f32 %v999, %v1055
    %v1058 = vstv %s471
    %v1059 = vadd.f32 %v650, %v1058
    %v1060 = vadd.f32 %v651, %v1058
    %v1061 = vadd.f32 %v708, %v1058
    %v1062 = vadd.f32 %v709, %v1058
    %v1063 = vadd.f32 %v766, %v1058
    %v1064 = vadd.f32 %v767, %v1058
    %v1065 = vadd.f32 %v824, %v1058
    %v1066 = vadd.f32 %v825, %v1058
    %v1067 = vadd.f32 %v882, %v1058
    %v1068 = vadd.f32 %v883, %v1058
    %v1069 = vadd.f32 %v940, %v1058
    %v1070 = vadd.f32 %v941, %v1058
    %v1071 = vadd.f32 %v998, %v1058
    %v1072 = vadd.f32 %v999, %v1058
    %v1073 = vadd.f32 %v1056, %v1058
    %v1074 = vadd.f32 %v1057, %v1058
    %v1075 = vadd.f32 %v585, %v1058
    %v1076 = vadd.f32 %v588, %v1058
    %1079 = vrot.lane.b32.xlu0 %v560, 16
    %v1080 = vpop.permute.xlu0 %1079
    %1081 = vrot.lane.b32.xlu0 %v565, 16
    %v1082 = vpop.permute.xlu0 %1081
    %v1085 = vsel %vm468, %v475, %v1080
    %v1086 = vsel %vm468, %v476, %v1082
    %vm1087 = vcmask 392192
    %v1088 = vsel %vm1087, %v1085, %v1059
    %v1089 = vsel %vm1087, %v1086, %v1060
    %vm1090 = vcmask 400384
    %v1091 = vsel %vm1090, %v1088, %v1061
    %v1092 = vsel %vm1090, %v1089, %v1062
    %vm1093 = vcmask 408576
    %v1094 = vsel %vm1093, %v1091, %v1063
    %v1095 = vsel %vm1093, %v1092, %v1064
    %vm1096 = vcmask 416768
    %v1097 = vsel %vm1096, %v1094, %v1065
    %v1098 = vsel %vm1096, %v1095, %v1066
    %vm1099 = vcmask 424960
    %v1100 = vsel %vm1099, %v1097, %v1067
    %v1101 = vsel %vm1099, %v1098, %v1068
    %vm1102 = vcmask 433152
    %v1103 = vsel %vm1102, %v1100, %v1069
    %v1104 = vsel %vm1102, %v1101, %v1070
    %vm1105 = vcmask 441344
    %v1106 = vsel %vm1105, %v1103, %v1071
    %v1107 = vsel %vm1105, %v1104, %v1072
    %vm1108 = vcmask 449536
    %v1109 = vsel %vm1108, %v1106, %v1073
    %v1110 = vsel %vm1108, %v1107, %v1074
    %vm1111 = vcmask 457728
    %v1112 = vsel %vm1111, %v1109, %v1075
    %v1113 = vsel %vm1111, %v1110, %v1076
    %vm1114 = vcmask 465920
    %1115 = vst.msk [vmem:[#allocation4] sm:$0xff] %vm1114, %v1112
    %1116 = vst.msk [vmem:[#allocation4 + $0x8] sm:$0xff] %vm1114, %v1113
    // Predicated region
    $region22: #{tpu_custom_call.1} parent=1 // pred_check
      _
    $region23: #{tpu_custom_call.1} parent=1 // pred_check_branch
      %1118 = sbr.rel (0) target = $region25
    $region24: #{tpu_custom_call.1} parent=1 // pred_region
      %s1120 = ssub.s32 256, 256
      %1121 = vsyncadd [#allocation5], %s1120
      %s1122 = sshll.u32 [#allocation4], 4
      %s1123 = int_to_ptr.vmem [resolvable:$true] %s1122
      %1128 = dma.vmem_to_hbm [thread:$0]  %s1123, 256, %s5, [#allocation5], 128, 128, 8
    $region25: #{tpu_custom_call.1} parent=1 // pred_fallthru
      _
    // Predicated region
    $region26: #{tpu_custom_call.1} parent=1 // pred_check
      _
    $region27: #{tpu_custom_call.1} parent=1 // pred_check_branch
      %1130 = sbr.rel (0) target = $region29
    $region28: #{tpu_custom_call.1} parent=1 // pred_region
      %1131 = dma.done [#allocation5], 256
    $region29: #{tpu_custom_call.1} parent=1 // pred_fallthru
      _
    %1132 = vsyncpa [#allocation5], 1

</llo_original>
